<compile_context>
chip_gen: v7x
topology: tpu7x:2x2x1
jax: 0.10.0
libtpu: 0.0.40
codegen_flags: <defaults>
</compile_context>

<pallas_src>
from math import sqrt, log

import numpy as np
import jax
import jax.numpy as jnp
from jax.experimental import pallas as pl
from jax.experimental.pallas import tpu as pltpu


def _make_kernel(C, half, SR):
    def kernel(sigma0_ref, coefs_ref, heun_ref, start_ref, ninit_ref,
               neps_ref, nren_ref, w3_ref, b_ref, tw_ref,
               out_ref, inpaint_ref, x_ref):
        s = pl.program_id(1)      # span index
        j = pl.program_id(2)      # flattened (step, resample) index

        # ---- init carried state ----
        @pl.when((s == 0) & (j == 0))
        def _():
            # inpaint first half <- second half of the start span.
            inpaint_ref[...] = start_ref[...]

        @pl.when(j == 0)
        def _():
            # x = sigmas[0] * randn_like(inpaint)
            x_ref[...] = sigma0_ref[0] * ninit_ref[...]

        # ---- per-step scalar coefficients (precomputed on host, SMEM) ----
        ns_scale  = coefs_ref[j, 0]    # s_noise * sqrt(sigma_hat^2 - sigma^2)
        c_in_h    = coefs_ref[j, 1]
        c_skip_h  = coefs_ref[j, 2]
        c_out_h   = coefs_ref[j, 3]
        c_noise_h = coefs_ref[j, 4]
        inv_sh    = coefs_ref[j, 5]    # 1 / sigma_hat
        eul_coef  = coefs_ref[j, 6]    # sigma_next - sigma_hat
        heun_coef = coefs_ref[j, 7]    # 0.5 * (sigma - sigma_hat)
        c_in_n    = coefs_ref[j, 8]
        c_skip_n  = coefs_ref[j, 9]
        c_out_n   = coefs_ref[j, 10]
        c_noise_n = coefs_ref[j, 11]
        inv_sn    = coefs_ref[j, 12]   # 1 / sigma_next
        ren_coef  = coefs_ref[j, 13]   # sigma - sigma_next

        def apply_net(xin, c_noise):
            # 1x1 conv as C VPU MACs: pred[h,o,l] = sum_c w[c,o]*xin[h,c,l] + b[o] + c_noise*t_w[o]
            acc = w3_ref[0] * xin[:, 0:1, :]              # (C,1)*(2,1,half) -> (2,C,half)
            for c in range(1, C):
                acc = acc + w3_ref[c] * xin[:, c:c + 1, :]
            return acc + b_ref[...] + c_noise * tw_ref[...]

        def denoise(xh, c_in, c_skip, c_out, c_noise):
            pred = apply_net(c_in * xh, c_noise)
            return jnp.clip(c_skip * xh + c_out * pred, -1.0, 1.0)

        # ---- one RePaint / Heun sampling step ----
        # Sequential-mask blend: the first-half page of x is dead state, so the
        # blend is simply an in-place overwrite of page 0 with the inpaint.
        x_ref[0] = inpaint_ref[...]
        noise = ns_scale * neps_ref[...].astype(jnp.float32)
        x_hat = x_ref[...] + noise                        # (2, C, half)

        den = denoise(x_hat, c_in_h, c_skip_h, c_out_h, c_noise_h)
        d = (x_hat - den) * inv_sh
        x_euler = x_hat + eul_coef * d
        ren = ren_coef * nren_ref[...].astype(jnp.float32)

        x_ref[...] = x_euler + ren        # Euler result (kept when sigma_next == 0)

        @pl.when(heun_ref[j] != 0)        # Heun correction on all but the last outer step
        def _():
            den_n = denoise(x_euler, c_in_n, c_skip_n, c_out_n, c_noise_n)
            d_prime = (x_euler - den_n) * inv_sn
            x_ref[...] = x_hat + heun_coef * (d + d_prime) + ren

        # ---- finalize at the end of the span ----
        @pl.when(j == SR - 1)
        def _():
            second = jnp.clip(x_ref[1], -1.0, 1.0)        # (C, half)
            out_ref[...] = second
            inpaint_ref[...] = second                     # carry into the next span

    return kernel


def span_by_span_composer(start, *, num_spans, num_steps, num_resamples,
                          sigma_data, s_churn, s_tmin, s_tmax, s_noise,
                          sigma_min, sigma_max, rho, w, bias, t_w, noise_key,
                          keep_start=False):
    B, C, L = start.shape
    assert L % 2 == 0 and num_steps >= 3
    half = L // 2
    SR = (num_steps - 1) * num_resamples

    # ---- Karras sigma schedule + per-step scalar coefficients (host) ----
    steps = np.arange(num_steps - 1, dtype=np.float64)
    rho_inv = 1.0 / rho
    sig = (sigma_max ** rho_inv
           + steps / (num_steps - 2) * (sigma_min ** rho_inv - sigma_max ** rho_inv)) ** rho
    sigmas = np.concatenate([sig, [0.0]]).astype(np.float32)
    gammas = np.where((sigmas >= s_tmin) & (sigmas <= s_tmax),
                      min(s_churn / num_steps, sqrt(2) - 1), 0.0).astype(np.float32)

    NC = 14
    coefs = np.zeros((SR, NC), np.float64)
    heun = np.zeros((SR,), np.int32)
    sd2 = float(sigma_data) ** 2
    for i in range(num_steps - 1):
        sigma, sigma_next = float(sigmas[i]), float(sigmas[i + 1])
        gamma = float(gammas[i])
        sigma_hat = sigma + gamma * sigma
        tot_h = sigma_hat * sigma_hat + sd2
        row = [s_noise * sqrt(sigma_hat * sigma_hat - sigma * sigma),
               tot_h ** -0.5, sd2 / tot_h, sigma_hat * sigma_data * tot_h ** -0.5,
               0.25 * log(sigma_hat), 1.0 / sigma_hat,
               sigma_next - sigma_hat, 0.5 * (sigma - sigma_hat),
               0.0, 0.0, 0.0, 0.0, 0.0,
               sigma - sigma_next]
        if sigma_next != 0.0:
            tot_n = sigma_next * sigma_next + sd2
            row[8:13] = [tot_n ** -0.5, sd2 / tot_n,
                         sigma_next * sigma_data * tot_n ** -0.5,
                         0.25 * log(sigma_next), 1.0 / sigma_next]
        for r in range(num_resamples):
            jj = i * num_resamples + r
            coefs[jj] = row
            heun[jj] = 1 if sigma_next != 0.0 else 0
    coefs_j = jnp.asarray(coefs.astype(np.float32))
    heun_j = jnp.asarray(heun)
    sigma0 = jnp.asarray(sigmas[:1])

    # ---- pre-drawn Gaussian noise, generated directly in kernel layout ----
    # (num_spans, [SR,] B, 2, C, half): page 0 = first-half positions, page 1 = second half.
    k1, k2, k3 = jax.random.split(noise_key, 3)
    n_init = jax.random.normal(k1, (num_spans, B, 2, C, half), jnp.float32)
    n_eps = jax.random.normal(k2, (num_spans, SR, B, 2, C, half),
                              jnp.float32).astype(jnp.bfloat16)
    n_ren = jax.random.normal(k3, (num_spans, SR, B, 2, C, half),
                              jnp.float32).astype(jnp.bfloat16)

    # (B, C, L) -> (B, 2, C, half): tiny one-time reshuffle of the start span.
    start2 = jnp.transpose(start.astype(jnp.float32).reshape(B, C, 2, half),
                           (0, 2, 1, 3))
    w3 = w.astype(jnp.float32)[:, :, None]         # (C_in, C_out, 1)
    bias_col = bias.astype(jnp.float32)[:, None]   # (C, 1)
    tw_col = t_w.astype(jnp.float32)[:, None]      # (C, 1)

    kernel = _make_kernel(C, half, SR)

    out = pl.pallas_call(
        kernel,
        out_shape=jax.ShapeDtypeStruct((num_spans, B, C, half), jnp.float32),
        grid=(B, num_spans, SR),
        in_specs=[
            pl.BlockSpec(memory_space=pltpu.MemorySpace.SMEM),          # sigma0 (1,)
            pl.BlockSpec(memory_space=pltpu.MemorySpace.SMEM),          # coefs (SR, 14)
            pl.BlockSpec(memory_space=pltpu.MemorySpace.SMEM),          # heun flags (SR,)
            pl.BlockSpec((None, None, C, half),                         # start second half
                         lambda b, s, j: (b, 1, 0, 0)),
            pl.BlockSpec((None, None, 2, C, half),                      # init noise (per span)
                         lambda b, s, j: (s, b, 0, 0, 0)),
            pl.BlockSpec((None, None, None, 2, C, half),                # step epsilon (per step)
                         lambda b, s, j: (s, j, b, 0, 0, 0)),
            pl.BlockSpec((None, None, None, 2, C, half),                # renoise noise (per step)
                         lambda b, s, j: (s, j, b, 0, 0, 0)),
            pl.BlockSpec((C, C, 1), lambda b, s, j: (0, 0, 0)),         # net weight
            pl.BlockSpec((C, 1), lambda b, s, j: (0, 0)),               # net bias
            pl.BlockSpec((C, 1), lambda b, s, j: (0, 0)),               # net time weight
        ],
        out_specs=pl.BlockSpec((None, None, C, half), lambda b, s, j: (s, b, 0, 0)),
        scratch_shapes=[pltpu.VMEM((C, half), jnp.float32),             # carried inpaint half
                        pltpu.VMEM((2, C, half), jnp.float32)],         # carried sample x
        compiler_params=pltpu.CompilerParams(
            dimension_semantics=("parallel", "arbitrary", "arbitrary")),
    )(sigma0, coefs_j, heun_j, start2, n_init, n_eps, n_ren, w3, bias_col, tw_col)

    # (num_spans, B, C, half) -> (B, C, num_spans*half)
    result = jnp.transpose(out, (1, 2, 0, 3)).reshape(B, C, num_spans * half)
    if keep_start:
        result = jnp.concatenate(
            [start[:, :, :half], start[:, :, half:], result], axis=2)
    aux = (sigmas, gammas, n_init, n_eps, n_ren)
    return result, aux


def _reference(start, sigmas, gammas, n_init, n_eps_bf, n_ren_bf, w, bias, t_w, *,
               num_spans, num_steps, num_resamples, sigma_data, s_noise,
               keep_start=False):
    """Pure-JAX mirror of SpanBySpanComposer.forward (same semantics)."""
    B, C, L = start.shape
    half = L // 2
    sd2 = float(sigma_data) ** 2
    mask = (jnp.arange(L) < half)[None, None, :]
    inpaint = jnp.zeros_like(start).at[:, :, :half].set(start[:, :, half:])

    def to_bcl(n):  # (B, 2, C, half) -> (B, C, L)
        return jnp.transpose(n.astype(jnp.float32), (0, 2, 1, 3)).reshape(B, C, L)

    def denoise(x, sigma):
        tot = sigma * sigma + sd2
        c_skip, c_out, c_in = sd2 / tot, sigma * sigma_data * tot ** -0.5, tot ** -0.5
        c_noise = 0.25 * log(sigma)
        pred = (jnp.einsum('co,bcl->bol', w, c_in * x,
                           precision=jax.lax.Precision.HIGHEST)
                + bias[None, :, None] + c_noise * t_w[None, :, None])
        return jnp.clip(c_skip * x + c_out * pred, -1.0, 1.0)

    spans = []
    for s in range(num_spans):
        x = float(sigmas[0]) * to_bcl(n_init[s])
        for i in range(num_steps - 1):
            sigma, sigma_next = float(sigmas[i]), float(sigmas[i + 1])
            gamma = float(gammas[i])
            sigma_hat = sigma + gamma * sigma
            for r in range(num_resamples):
                idx = i * num_resamples + r
                eps = s_noise * to_bcl(n_eps_bf[s, idx])
                noise = sqrt(sigma_hat ** 2 - sigma ** 2) * eps
                x_hat = jnp.where(mask, inpaint, x) + noise
                d = (x_hat - denoise(x_hat, sigma_hat)) / sigma_hat
                x_next = x_hat + (sigma_next - sigma_hat) * d
                if sigma_next != 0.0:
                    d_prime = (x_next - denoise(x_next, sigma_next)) / sigma_next
                    x_next = x_hat + 0.5 * (sigma - sigma_hat) * (d + d_prime)
                # renoise flag is always True inside the loop.
                x = x_next + (sigma - sigma_next) * to_bcl(n_ren_bf[s, idx])
        x = jnp.clip(x, -1.0, 1.0)
        x = jnp.where(mask, inpaint, x)
        second = x[:, :, half:]
        inpaint = inpaint.at[:, :, :half].set(second)
        spans.append(second)
    out = jnp.concatenate(spans, axis=2)
    if keep_start:
        out = jnp.concatenate(
            [start[:, :, :half], start[:, :, half:], out], axis=2)
    return out


if __name__ == "__main__":
    # Small shapes: batch=2, channels=8, length=16 (audio, NCL).
    B, C, L = 2, 8, 16
    num_spans, num_steps, num_resamples = 3, 4, 2
    sigma_data = 0.5
    sigma_min, sigma_max, rho = 0.1, 10.0, 7.0
    s_churn, s_tmin, s_tmax, s_noise = 5.0, 0.05, 50.0, 1.0

    root = jax.random.PRNGKey(0)
    k_start, k_w, k_b, k_t, k_noise = jax.random.split(root, 5)

    start = jax.random.normal(k_start, (B, C, L), jnp.float32)
    # Synthetic denoiser-net parameters (1x1 conv, w[c_in, c_out]).
    w = jax.random.normal(k_w, (C, C), jnp.float32) / sqrt(C)
    bias = 0.1 * jax.random.normal(k_b, (C,), jnp.float32)
    t_w = 0.1 * jax.random.normal(k_t, (C,), jnp.float32)

    out, (sigmas, gammas, n_init, n_eps, n_ren) = span_by_span_composer(
        start, num_spans=num_spans, num_steps=num_steps, num_resamples=num_resamples,
        sigma_data=sigma_data, s_churn=s_churn, s_tmin=s_tmin, s_tmax=s_tmax,
        s_noise=s_noise, sigma_min=sigma_min, sigma_max=sigma_max, rho=rho,
        w=w, bias=bias, t_w=t_w, noise_key=k_noise, keep_start=False)
    out = jax.block_until_ready(out)

    ref = _reference(start, sigmas, gammas, n_init, n_eps, n_ren, w, bias, t_w,
                     num_spans=num_spans, num_steps=num_steps,
                     num_resamples=num_resamples, sigma_data=sigma_data,
                     s_noise=s_noise, keep_start=False)

    assert out.shape == (B, C, num_spans * (L // 2)), out.shape
    max_err = float(jnp.max(jnp.abs(out - ref)))
    assert jnp.allclose(out, ref, atol=2e-3, rtol=2e-3), max_err
    print("KERNEL_OK")
</pallas_src>

<mosaic_0001>
module attributes {stable_mosaic.version = 11 : i64} {
  func.func @kernel(%arg0: i32, %arg1: i32, %arg2: i32, %arg3: memref<1xf32, #tpu.memory_space<smem>>, %arg4: memref<6x14xf32, #tpu.memory_space<smem>>, %arg5: memref<6xi32, #tpu.memory_space<smem>>, %arg6: memref<1x1x8x8xf32, #tpu.memory_space<vmem>>, %arg7: memref<1x1x2x8x8xf32, #tpu.memory_space<vmem>>, %arg8: memref<1x1x1x2x8x8xbf16, #tpu.memory_space<vmem>>, %arg9: memref<1x1x1x2x8x8xbf16, #tpu.memory_space<vmem>>, %arg10: memref<8x8x1xf32, #tpu.memory_space<vmem>>, %arg11: memref<8x1xf32, #tpu.memory_space<vmem>>, %arg12: memref<8x1xf32, #tpu.memory_space<vmem>>, %arg13: memref<1x1x8x8xf32, #tpu.memory_space<vmem>>, %arg14: memref<8x8xf32, #tpu.memory_space<vmem>>, %arg15: memref<2x8x8xf32, #tpu.memory_space<vmem>>) attributes {dimension_semantics = [#tpu.dimension_semantics<parallel>, #tpu.dimension_semantics<arbitrary>, #tpu.dimension_semantics<arbitrary>], iteration_bounds = array<i64: 2, 3, 6>, scalar_prefetch = 0 : i64, scratch_operands = 2 : i64, tpu.core_type = #tpu.core_type<tc>, window_params = [{transform_indices = @transform_0, window_bounds = array<i64: 1>}, {transform_indices = @transform_1, window_bounds = array<i64: 6, 14>}, {transform_indices = @transform_2, window_bounds = array<i64: 6>}, {transform_indices = @transform_3, window_bounds = array<i64: 1, 1, 8, 8>}, {transform_indices = @transform_4, window_bounds = array<i64: 1, 1, 2, 8, 8>}, {transform_indices = @transform_5, window_bounds = array<i64: 1, 1, 1, 2, 8, 8>}, {transform_indices = @transform_6, window_bounds = array<i64: 1, 1, 1, 2, 8, 8>}, {pipeline_mode = #tpu.pipeline_mode<synchronous>, transform_indices = @transform_7, window_bounds = array<i64: 8, 8, 1>}, {pipeline_mode = #tpu.pipeline_mode<synchronous>, transform_indices = @transform_8, window_bounds = array<i64: 8, 1>}, {pipeline_mode = #tpu.pipeline_mode<synchronous>, transform_indices = @transform_9, window_bounds = array<i64: 8, 1>}, {transform_indices = @transform_10, window_bounds = array<i64: 1, 1, 8, 8>}]} {
    %c0_i32 = arith.constant 0 : i32
    %0 = arith.cmpi eq, %arg1, %c0_i32 : i32
    %c0_i32_0 = arith.constant 0 : i32
    %1 = arith.cmpi eq, %arg2, %c0_i32_0 : i32
    %2 = arith.andi %0, %1 : i1
    %3 = arith.extui %2 : i1 to i32
    %c0_i32_1 = arith.constant 0 : i32
    %4 = arith.cmpi ne, %3, %c0_i32_1 : i32
    scf.if %4 {
      %c0_59 = arith.constant 0 : index
      %c0_60 = arith.constant 0 : index
      %c0_61 = arith.constant 0 : index
      %c0_62 = arith.constant 0 : index
      %152 = vector.load %arg6[%c0_59, %c0_60, %c0_61, %c0_62] : memref<1x1x8x8xf32, #tpu.memory_space<vmem>>, vector<1x1x8x8xf32>
      %153 = vector.shape_cast %152 : vector<1x1x8x8xf32> to vector<8x8xf32>
      %c0_63 = arith.constant 0 : index
      %c0_64 = arith.constant 0 : index
      %154 = vector.load %arg14[%c0_63, %c0_64] : memref<8x8xf32, #tpu.memory_space<vmem>>, vector<8x8xf32>
      tpu.vector_store %arg14[%c0_63, %c0_64], %153 {strides = array<i32>} : memref<8x8xf32, #tpu.memory_space<vmem>>, vector<8x8xf32>,
    } else {
    }
    %c0_i32_2 = arith.constant 0 : i32
    %5 = arith.cmpi eq, %arg2, %c0_i32_2 : i32
    %6 = arith.extui %5 : i1 to i32
    %c0_i32_3 = arith.constant 0 : i32
    %7 = arith.cmpi ne, %6, %c0_i32_3 : i32
    scf.if %7 {
      %c0_59 = arith.constant 0 : index
      %152 = memref.load %arg3[%c0_59] : memref<1xf32, #tpu.memory_space<smem>>
      %c0_60 = arith.constant 0 : index
      %c0_61 = arith.constant 0 : index
      %c0_62 = arith.constant 0 : index
      %c0_63 = arith.constant 0 : index
      %c0_64 = arith.constant 0 : index
      %153 = vector.load %arg7[%c0_60, %c0_61, %c0_62, %c0_63, %c0_64] : memref<1x1x2x8x8xf32, #tpu.memory_space<vmem>>, vector<1x1x2x8x8xf32>
      %154 = vector.shape_cast %153 : vector<1x1x2x8x8xf32> to vector<2x8x8xf32>
      %155 = vector.broadcast %152 : f32 to vector<2x8x8xf32>
      %156 = arith.mulf %155, %154 : vector<2x8x8xf32>
      %c0_65 = arith.constant 0 : index
      %c0_66 = arith.constant 0 : index
      %c0_67 = arith.constant 0 : index
      %157 = vector.load %arg15[%c0_65, %c0_66, %c0_67] : memref<2x8x8xf32, #tpu.memory_space<vmem>>, vector<2x8x8xf32>
      tpu.vector_store %arg15[%c0_65, %c0_66, %c0_67], %156 {strides = array<i32>} : memref<2x8x8xf32, #tpu.memory_space<vmem>>, vector<2x8x8xf32>,
    } else {
    }
    %8 = arith.index_cast %arg2 : i32 to index
    %c0 = arith.constant 0 : index
    %9 = memref.load %arg4[%8, %c0] : memref<6x14xf32, #tpu.memory_space<smem>>
    %10 = arith.index_cast %arg2 : i32 to index
    %c1 = arith.constant 1 : index
    %11 = memref.load %arg4[%10, %c1] : memref<6x14xf32, #tpu.memory_space<smem>>
    %12 = arith.index_cast %arg2 : i32 to index
    %c2 = arith.constant 2 : index
    %13 = memref.load %arg4[%12, %c2] : memref<6x14xf32, #tpu.memory_space<smem>>
    %14 = arith.index_cast %arg2 : i32 to index
    %c3 = arith.constant 3 : index
    %15 = memref.load %arg4[%14, %c3] : memref<6x14xf32, #tpu.memory_space<smem>>
    %16 = arith.index_cast %arg2 : i32 to index
    %c4 = arith.constant 4 : index
    %17 = memref.load %arg4[%16, %c4] : memref<6x14xf32, #tpu.memory_space<smem>>
    %18 = arith.index_cast %arg2 : i32 to index
    %c5 = arith.constant 5 : index
    %19 = memref.load %arg4[%18, %c5] : memref<6x14xf32, #tpu.memory_space<smem>>
    %20 = arith.index_cast %arg2 : i32 to index
    %c6 = arith.constant 6 : index
    %21 = memref.load %arg4[%20, %c6] : memref<6x14xf32, #tpu.memory_space<smem>>
    %22 = arith.index_cast %arg2 : i32 to index
    %c7 = arith.constant 7 : index
    %23 = memref.load %arg4[%22, %c7] : memref<6x14xf32, #tpu.memory_space<smem>>
    %24 = arith.index_cast %arg2 : i32 to index
    %c8 = arith.constant 8 : index
    %25 = memref.load %arg4[%24, %c8] : memref<6x14xf32, #tpu.memory_space<smem>>
    %26 = arith.index_cast %arg2 : i32 to index
    %c9 = arith.constant 9 : index
    %27 = memref.load %arg4[%26, %c9] : memref<6x14xf32, #tpu.memory_space<smem>>
    %28 = arith.index_cast %arg2 : i32 to index
    %c10 = arith.constant 10 : index
    %29 = memref.load %arg4[%28, %c10] : memref<6x14xf32, #tpu.memory_space<smem>>
    %30 = arith.index_cast %arg2 : i32 to index
    %c11 = arith.constant 11 : index
    %31 = memref.load %arg4[%30, %c11] : memref<6x14xf32, #tpu.memory_space<smem>>
    %32 = arith.index_cast %arg2 : i32 to index
    %c12 = arith.constant 12 : index
    %33 = memref.load %arg4[%32, %c12] : memref<6x14xf32, #tpu.memory_space<smem>>
    %34 = arith.index_cast %arg2 : i32 to index
    %c13 = arith.constant 13 : index
    %35 = memref.load %arg4[%34, %c13] : memref<6x14xf32, #tpu.memory_space<smem>>
    %c0_4 = arith.constant 0 : index
    %c0_5 = arith.constant 0 : index
    %36 = vector.load %arg14[%c0_4, %c0_5] : memref<8x8xf32, #tpu.memory_space<vmem>>, vector<8x8xf32>
    %c0_6 = arith.constant 0 : index
    %c0_7 = arith.constant 0 : index
    %c0_8 = arith.constant 0 : index
    %37 = vector.load %arg15[%c0_6, %c0_7, %c0_8] : memref<2x8x8xf32, #tpu.memory_space<vmem>>, vector<1x8x8xf32>
    %38 = vector.shape_cast %37 : vector<1x8x8xf32> to vector<8x8xf32>
    %39 = vector.shape_cast %36 : vector<8x8xf32> to vector<1x8x8xf32>
    tpu.vector_store %arg15[%c0_6, %c0_7, %c0_8], %39 {strides = array<i32>} : memref<2x8x8xf32, #tpu.memory_space<vmem>>, vector<1x8x8xf32>,
    %c0_9 = arith.constant 0 : index
    %c0_10 = arith.constant 0 : index
    %c0_11 = arith.constant 0 : index
    %c0_12 = arith.constant 0 : index
    %c0_13 = arith.constant 0 : index
    %c0_14 = arith.constant 0 : index
    %40 = vector.load %arg8[%c0_9, %c0_10, %c0_11, %c0_12, %c0_13, %c0_14] : memref<1x1x1x2x8x8xbf16, #tpu.memory_space<vmem>>, vector<1x1x1x2x8x8xbf16>
    %41 = vector.shape_cast %40 : vector<1x1x1x2x8x8xbf16> to vector<2x8x8xbf16>
    %42 = arith.extf %41 : vector<2x8x8xbf16> to vector<2x8x8xf32>
    %43 = vector.broadcast %9 : f32 to vector<2x8x8xf32>
    %44 = arith.mulf %43, %42 : vector<2x8x8xf32>
    %c0_15 = arith.constant 0 : index
    %c0_16 = arith.constant 0 : index
    %c0_17 = arith.constant 0 : index
    %45 = vector.load %arg15[%c0_15, %c0_16, %c0_17] : memref<2x8x8xf32, #tpu.memory_space<vmem>>, vector<2x8x8xf32>
    %46 = arith.addf %45, %44 : vector<2x8x8xf32>
    %47 = vector.broadcast %11 : f32 to vector<2x8x8xf32>
    %48 = arith.mulf %47, %46 : vector<2x8x8xf32>
    %c0_18 = arith.constant 0 : index
    %c0_19 = arith.constant 0 : index
    %c0_20 = arith.constant 0 : index
    %49 = vector.load %arg10[%c0_18, %c0_19, %c0_20] : memref<8x8x1xf32, #tpu.memory_space<vmem>>, vector<1x8x1xf32>
    %50 = vector.shape_cast %49 : vector<1x8x1xf32> to vector<8x1xf32>
    %51 = vector.extract_strided_slice %48 {offsets = [0, 0, 0], sizes = [2, 1, 8], strides = [1, 1, 1]} : vector<2x8x8xf32> to vector<2x1x8xf32>
    %52 = vector.shape_cast %50 : vector<8x1xf32> to vector<1x8x1xf32>
    %53 = vector.broadcast %52 : vector<1x8x1xf32> to vector<2x8x8xf32>
    %54 = vector.broadcast %51 : vector<2x1x8xf32> to vector<2x8x8xf32>
    %55 = arith.mulf %53, %54 : vector<2x8x8xf32>
    %c1_21 = arith.constant 1 : index
    %c0_22 = arith.constant 0 : index
    %c0_23 = arith.constant 0 : index
    %56 = vector.load %arg10[%c1_21, %c0_22, %c0_23] : memref<8x8x1xf32, #tpu.memory_space<vmem>>, vector<1x8x1xf32>
    %57 = vector.shape_cast %56 : vector<1x8x1xf32> to vector<8x1xf32>
    %58 = vector.extract_strided_slice %48 {offsets = [0, 1, 0], sizes = [2, 1, 8], strides = [1, 1, 1]} : vector<2x8x8xf32> to vector<2x1x8xf32>
    %59 = vector.shape_cast %57 : vector<8x1xf32> to vector<1x8x1xf32>
    %60 = vector.broadcast %59 : vector<1x8x1xf32> to vector<2x8x8xf32>
    %61 = vector.broadcast %58 : vector<2x1x8xf32> to vector<2x8x8xf32>
    %62 = arith.mulf %60, %61 : vector<2x8x8xf32>
    %63 = arith.addf %55, %62 : vector<2x8x8xf32>
    %c2_24 = arith.constant 2 : index
    %c0_25 = arith.constant 0 : index
    %c0_26 = arith.constant 0 : index
    %64 = vector.load %arg10[%c2_24, %c0_25, %c0_26] : memref<8x8x1xf32, #tpu.memory_space<vmem>>, vector<1x8x1xf32>
    %65 = vector.shape_cast %64 : vector<1x8x1xf32> to vector<8x1xf32>
    %66 = vector.extract_strided_slice %48 {offsets = [0, 2, 0], sizes = [2, 1, 8], strides = [1, 1, 1]} : vector<2x8x8xf32> to vector<2x1x8xf32>
    %67 = vector.shape_cast %65 : vector<8x1xf32> to vector<1x8x1xf32>
    %68 = vector.broadcast %67 : vector<1x8x1xf32> to vector<2x8x8xf32>
    %69 = vector.broadcast %66 : vector<2x1x8xf32> to vector<2x8x8xf32>
    %70 = arith.mulf %68, %69 : vector<2x8x8xf32>
    %71 = arith.addf %63, %70 : vector<2x8x8xf32>
    %c3_27 = arith.constant 3 : index
    %c0_28 = arith.constant 0 : index
    %c0_29 = arith.constant 0 : index
    %72 = vector.load %arg10[%c3_27, %c0_28, %c0_29] : memref<8x8x1xf32, #tpu.memory_space<vmem>>, vector<1x8x1xf32>
    %73 = vector.shape_cast %72 : vector<1x8x1xf32> to vector<8x1xf32>
    %74 = vector.extract_strided_slice %48 {offsets = [0, 3, 0], sizes = [2, 1, 8], strides = [1, 1, 1]} : vector<2x8x8xf32> to vector<2x1x8xf32>
    %75 = vector.shape_cast %73 : vector<8x1xf32> to vector<1x8x1xf32>
    %76 = vector.broadcast %75 : vector<1x8x1xf32> to vector<2x8x8xf32>
    %77 = vector.broadcast %74 : vector<2x1x8xf32> to vector<2x8x8xf32>
    %78 = arith.mulf %76, %77 : vector<2x8x8xf32>
    %79 = arith.addf %71, %78 : vector<2x8x8xf32>
    %c4_30 = arith.constant 4 : index
    %c0_31 = arith.constant 0 : index
    %c0_32 = arith.constant 0 : index
    %80 = vector.load %arg10[%c4_30, %c0_31, %c0_32] : memref<8x8x1xf32, #tpu.memory_space<vmem>>, vector<1x8x1xf32>
    %81 = vector.shape_cast %80 : vector<1x8x1xf32> to vector<8x1xf32>
    %82 = vector.extract_strided_slice %48 {offsets = [0, 4, 0], sizes = [2, 1, 8], strides = [1, 1, 1]} : vector<2x8x8xf32> to vector<2x1x8xf32>
    %83 = vector.shape_cast %81 : vector<8x1xf32> to vector<1x8x1xf32>
    %84 = vector.broadcast %83 : vector<1x8x1xf32> to vector<2x8x8xf32>
    %85 = vector.broadcast %82 : vector<2x1x8xf32> to vector<2x8x8xf32>
    %86 = arith.mulf %84, %85 : vector<2x8x8xf32>
    %87 = arith.addf %79, %86 : vector<2x8x8xf32>
    %c5_33 = arith.constant 5 : index
    %c0_34 = arith.constant 0 : index
    %c0_35 = arith.constant 0 : index
    %88 = vector.load %arg10[%c5_33, %c0_34, %c0_35] : memref<8x8x1xf32, #tpu.memory_space<vmem>>, vector<1x8x1xf32>
    %89 = vector.shape_cast %88 : vector<1x8x1xf32> to vector<8x1xf32>
    %90 = vector.extract_strided_slice %48 {offsets = [0, 5, 0], sizes = [2, 1, 8], strides = [1, 1, 1]} : vector<2x8x8xf32> to vector<2x1x8xf32>
    %91 = vector.shape_cast %89 : vector<8x1xf32> to vector<1x8x1xf32>
    %92 = vector.broadcast %91 : vector<1x8x1xf32> to vector<2x8x8xf32>
    %93 = vector.broadcast %90 : vector<2x1x8xf32> to vector<2x8x8xf32>
    %94 = arith.mulf %92, %93 : vector<2x8x8xf32>
    %95 = arith.addf %87, %94 : vector<2x8x8xf32>
    %c6_36 = arith.constant 6 : index
    %c0_37 = arith.constant 0 : index
    %c0_38 = arith.constant 0 : index
    %96 = vector.load %arg10[%c6_36, %c0_37, %c0_38] : memref<8x8x1xf32, #tpu.memory_space<vmem>>, vector<1x8x1xf32>
    %97 = vector.shape_cast %96 : vector<1x8x1xf32> to vector<8x1xf32>
    %98 = vector.extract_strided_slice %48 {offsets = [0, 6, 0], sizes = [2, 1, 8], strides = [1, 1, 1]} : vector<2x8x8xf32> to vector<2x1x8xf32>
    %99 = vector.shape_cast %97 : vector<8x1xf32> to vector<1x8x1xf32>
    %100 = vector.broadcast %99 : vector<1x8x1xf32> to vector<2x8x8xf32>
    %101 = vector.broadcast %98 : vector<2x1x8xf32> to vector<2x8x8xf32>
    %102 = arith.mulf %100, %101 : vector<2x8x8xf32>
    %103 = arith.addf %95, %102 : vector<2x8x8xf32>
    %c7_39 = arith.constant 7 : index
    %c0_40 = arith.constant 0 : index
    %c0_41 = arith.constant 0 : index
    %104 = vector.load %arg10[%c7_39, %c0_40, %c0_41] : memref<8x8x1xf32, #tpu.memory_space<vmem>>, vector<1x8x1xf32>
    %105 = vector.shape_cast %104 : vector<1x8x1xf32> to vector<8x1xf32>
    %106 = vector.extract_strided_slice %48 {offsets = [0, 7, 0], sizes = [2, 1, 8], strides = [1, 1, 1]} : vector<2x8x8xf32> to vector<2x1x8xf32>
    %107 = vector.shape_cast %105 : vector<8x1xf32> to vector<1x8x1xf32>
    %108 = vector.broadcast %107 : vector<1x8x1xf32> to vector<2x8x8xf32>
    %109 = vector.broadcast %106 : vector<2x1x8xf32> to vector<2x8x8xf32>
    %110 = arith.mulf %108, %109 : vector<2x8x8xf32>
    %111 = arith.addf %103, %110 : vector<2x8x8xf32>
    %c0_42 = arith.constant 0 : index
    %c0_43 = arith.constant 0 : index
    %112 = vector.load %arg11[%c0_42, %c0_43] : memref<8x1xf32, #tpu.memory_space<vmem>>, vector<8x1xf32>
    %113 = vector.shape_cast %112 : vector<8x1xf32> to vector<1x8x1xf32>
    %114 = vector.broadcast %113 : vector<1x8x1xf32> to vector<2x8x8xf32>
    %115 = arith.addf %111, %114 : vector<2x8x8xf32>
    %c0_44 = arith.constant 0 : index
    %c0_45 = arith.constant 0 : index
    %116 = vector.load %arg12[%c0_44, %c0_45] : memref<8x1xf32, #tpu.memory_space<vmem>>, vector<8x1xf32>
    %117 = vector.broadcast %17 : f32 to vector<8x1xf32>
    %118 = arith.mulf %117, %116 : vector<8x1xf32>
    %119 = vector.shape_cast %118 : vector<8x1xf32> to vector<1x8x1xf32>
    %120 = vector.broadcast %119 : vector<1x8x1xf32> to vector<2x8x8xf32>
    %121 = arith.addf %115, %120 : vector<2x8x8xf32>
    %122 = vector.broadcast %13 : f32 to vector<2x8x8xf32>
    %123 = arith.mulf %122, %46 : vector<2x8x8xf32>
    %124 = vector.broadcast %15 : f32 to vector<2x8x8xf32>
    %125 = arith.mulf %124, %121 : vector<2x8x8xf32>
    %126 = arith.addf %123, %125 : vector<2x8x8xf32>
    %cst = arith.constant -1.000000e+00 : f32
    %cst_46 = arith.constant 1.000000e+00 : f32
    %127 = vector.broadcast %cst : f32 to vector<2x8x8xf32>
    %128 = arith.maximumf %127, %126 : vector<2x8x8xf32>
    %129 = vector.broadcast %cst_46 : f32 to vector<2x8x8xf32>
    %130 = arith.minimumf %129, %128 : vector<2x8x8xf32>
    %131 = arith.subf %46, %130 : vector<2x8x8xf32>
    %132 = vector.broadcast %19 : f32 to vector<2x8x8xf32>
    %133 = arith.mulf %131, %132 : vector<2x8x8xf32>
    %134 = vector.broadcast %21 : f32 to vector<2x8x8xf32>
    %135 = arith.mulf %134, %133 : vector<2x8x8xf32>
    %136 = arith.addf %46, %135 : vector<2x8x8xf32>
    %c0_47 = arith.constant 0 : index
    %c0_48 = arith.constant 0 : index
    %c0_49 = arith.constant 0 : index
    %c0_50 = arith.constant 0 : index
    %c0_51 = arith.constant 0 : index
    %c0_52 = arith.constant 0 : index
    %137 = vector.load %arg9[%c0_47, %c0_48, %c0_49, %c0_50, %c0_51, %c0_52] : memref<1x1x1x2x8x8xbf16, #tpu.memory_space<vmem>>, vector<1x1x1x2x8x8xbf16>
    %138 = vector.shape_cast %137 : vector<1x1x1x2x8x8xbf16> to vector<2x8x8xbf16>
    %139 = arith.extf %138 : vector<2x8x8xbf16> to vector<2x8x8xf32>
    %140 = vector.broadcast %35 : f32 to vector<2x8x8xf32>
    %141 = arith.mulf %140, %139 : vector<2x8x8xf32>
    %142 = arith.addf %136, %141 : vector<2x8x8xf32>
    %c0_53 = arith.constant 0 : index
    %c0_54 = arith.constant 0 : index
    %c0_55 = arith.constant 0 : index
    %143 = vector.load %arg15[%c0_53, %c0_54, %c0_55] : memref<2x8x8xf32, #tpu.memory_space<vmem>>, vector<2x8x8xf32>
    tpu.vector_store %arg15[%c0_53, %c0_54, %c0_55], %142 {strides = array<i32>} : memref<2x8x8xf32, #tpu.memory_space<vmem>>, vector<2x8x8xf32>,
    %144 = arith.index_cast %arg2 : i32 to index
    %145 = memref.load %arg5[%144] : memref<6xi32, #tpu.memory_space<smem>>
    %c0_i32_56 = arith.constant 0 : i32
    %146 = arith.cmpi ne, %145, %c0_i32_56 : i32
    %147 = arith.extui %146 : i1 to i32
    %c0_i32_57 = arith.constant 0 : i32
    %148 = arith.cmpi ne, %147, %c0_i32_57 : i32
    scf.if %148 {
      %152 = vector.broadcast %25 : f32 to vector<2x8x8xf32>
      %153 = arith.mulf %152, %136 : vector<2x8x8xf32>
      %c0_59 = arith.constant 0 : index
      %c0_60 = arith.constant 0 : index
      %c0_61 = arith.constant 0 : index
      %154 = vector.load %arg10[%c0_59, %c0_60, %c0_61] : memref<8x8x1xf32, #tpu.memory_space<vmem>>, vector<1x8x1xf32>
      %155 = vector.shape_cast %154 : vector<1x8x1xf32> to vector<8x1xf32>
      %156 = vector.extract_strided_slice %153 {offsets = [0, 0, 0], sizes = [2, 1, 8], strides = [1, 1, 1]} : vector<2x8x8xf32> to vector<2x1x8xf32>
      %157 = vector.shape_cast %155 : vector<8x1xf32> to vector<1x8x1xf32>
      %158 = vector.broadcast %157 : vector<1x8x1xf32> to vector<2x8x8xf32>
      %159 = vector.broadcast %156 : vector<2x1x8xf32> to vector<2x8x8xf32>
      %160 = arith.mulf %158, %159 : vector<2x8x8xf32>
      %c1_62 = arith.constant 1 : index
      %c0_63 = arith.constant 0 : index
      %c0_64 = arith.constant 0 : index
      %161 = vector.load %arg10[%c1_62, %c0_63, %c0_64] : memref<8x8x1xf32, #tpu.memory_space<vmem>>, vector<1x8x1xf32>
      %162 = vector.shape_cast %161 : vector<1x8x1xf32> to vector<8x1xf32>
      %163 = vector.extract_strided_slice %153 {offsets = [0, 1, 0], sizes = [2, 1, 8], strides = [1, 1, 1]} : vector<2x8x8xf32> to vector<2x1x8xf32>
      %164 = vector.shape_cast %162 : vector<8x1xf32> to vector<1x8x1xf32>
      %165 = vector.broadcast %164 : vector<1x8x1xf32> to vector<2x8x8xf32>
      %166 = vector.broadcast %163 : vector<2x1x8xf32> to vector<2x8x8xf32>
      %167 = arith.mulf %165, %166 : vector<2x8x8xf32>
      %168 = arith.addf %160, %167 : vector<2x8x8xf32>
      %c2_65 = arith.constant 2 : index
      %c0_66 = arith.constant 0 : index
      %c0_67 = arith.constant 0 : index
      %169 = vector.load %arg10[%c2_65, %c0_66, %c0_67] : memref<8x8x1xf32, #tpu.memory_space<vmem>>, vector<1x8x1xf32>
      %170 = vector.shape_cast %169 : vector<1x8x1xf32> to vector<8x1xf32>
      %171 = vector.extract_strided_slice %153 {offsets = [0, 2, 0], sizes = [2, 1, 8], strides = [1, 1, 1]} : vector<2x8x8xf32> to vector<2x1x8xf32>
      %172 = vector.shape_cast %170 : vector<8x1xf32> to vector<1x8x1xf32>
      %173 = vector.broadcast %172 : vector<1x8x1xf32> to vector<2x8x8xf32>
      %174 = vector.broadcast %171 : vector<2x1x8xf32> to vector<2x8x8xf32>
      %175 = arith.mulf %173, %174 : vector<2x8x8xf32>
      %176 = arith.addf %168, %175 : vector<2x8x8xf32>
      %c3_68 = arith.constant 3 : index
      %c0_69 = arith.constant 0 : index
      %c0_70 = arith.constant 0 : index
      %177 = vector.load %arg10[%c3_68, %c0_69, %c0_70] : memref<8x8x1xf32, #tpu.memory_space<vmem>>, vector<1x8x1xf32>
      %178 = vector.shape_cast %177 : vector<1x8x1xf32> to vector<8x1xf32>
      %179 = vector.extract_strided_slice %153 {offsets = [0, 3, 0], sizes = [2, 1, 8], strides = [1, 1, 1]} : vector<2x8x8xf32> to vector<2x1x8xf32>
      %180 = vector.shape_cast %178 : vector<8x1xf32> to vector<1x8x1xf32>
      %181 = vector.broadcast %180 : vector<1x8x1xf32> to vector<2x8x8xf32>
      %182 = vector.broadcast %179 : vector<2x1x8xf32> to vector<2x8x8xf32>
      %183 = arith.mulf %181, %182 : vector<2x8x8xf32>
      %184 = arith.addf %176, %183 : vector<2x8x8xf32>
      %c4_71 = arith.constant 4 : index
      %c0_72 = arith.constant 0 : index
      %c0_73 = arith.constant 0 : index
      %185 = vector.load %arg10[%c4_71, %c0_72, %c0_73] : memref<8x8x1xf32, #tpu.memory_space<vmem>>, vector<1x8x1xf32>
      %186 = vector.shape_cast %185 : vector<1x8x1xf32> to vector<8x1xf32>
      %187 = vector.extract_strided_slice %153 {offsets = [0, 4, 0], sizes = [2, 1, 8], strides = [1, 1, 1]} : vector<2x8x8xf32> to vector<2x1x8xf32>
      %188 = vector.shape_cast %186 : vector<8x1xf32> to vector<1x8x1xf32>
      %189 = vector.broadcast %188 : vector<1x8x1xf32> to vector<2x8x8xf32>
      %190 = vector.broadcast %187 : vector<2x1x8xf32> to vector<2x8x8xf32>
      %191 = arith.mulf %189, %190 : vector<2x8x8xf32>
      %192 = arith.addf %184, %191 : vector<2x8x8xf32>
      %c5_74 = arith.constant 5 : index
      %c0_75 = arith.constant 0 : index
      %c0_76 = arith.constant 0 : index
      %193 = vector.load %arg10[%c5_74, %c0_75, %c0_76] : memref<8x8x1xf32, #tpu.memory_space<vmem>>, vector<1x8x1xf32>
      %194 = vector.shape_cast %193 : vector<1x8x1xf32> to vector<8x1xf32>
      %195 = vector.extract_strided_slice %153 {offsets = [0, 5, 0], sizes = [2, 1, 8], strides = [1, 1, 1]} : vector<2x8x8xf32> to vector<2x1x8xf32>
      %196 = vector.shape_cast %194 : vector<8x1xf32> to vector<1x8x1xf32>
      %197 = vector.broadcast %196 : vector<1x8x1xf32> to vector<2x8x8xf32>
      %198 = vector.broadcast %195 : vector<2x1x8xf32> to vector<2x8x8xf32>
      %199 = arith.mulf %197, %198 : vector<2x8x8xf32>
      %200 = arith.addf %192, %199 : vector<2x8x8xf32>
      %c6_77 = arith.constant 6 : index
      %c0_78 = arith.constant 0 : index
      %c0_79 = arith.constant 0 : index
      %201 = vector.load %arg10[%c6_77, %c0_78, %c0_79] : memref<8x8x1xf32, #tpu.memory_space<vmem>>, vector<1x8x1xf32>
      %202 = vector.shape_cast %201 : vector<1x8x1xf32> to vector<8x1xf32>
      %203 = vector.extract_strided_slice %153 {offsets = [0, 6, 0], sizes = [2, 1, 8], strides = [1, 1, 1]} : vector<2x8x8xf32> to vector<2x1x8xf32>
      %204 = vector.shape_cast %202 : vector<8x1xf32> to vector<1x8x1xf32>
      %205 = vector.broadcast %204 : vector<1x8x1xf32> to vector<2x8x8xf32>
      %206 = vector.broadcast %203 : vector<2x1x8xf32> to vector<2x8x8xf32>
      %207 = arith.mulf %205, %206 : vector<2x8x8xf32>
      %208 = arith.addf %200, %207 : vector<2x8x8xf32>
      %c7_80 = arith.constant 7 : index
      %c0_81 = arith.constant 0 : index
      %c0_82 = arith.constant 0 : index
      %209 = vector.load %arg10[%c7_80, %c0_81, %c0_82] : memref<8x8x1xf32, #tpu.memory_space<vmem>>, vector<1x8x1xf32>
      %210 = vector.shape_cast %209 : vector<1x8x1xf32> to vector<8x1xf32>
      %211 = vector.extract_strided_slice %153 {offsets = [0, 7, 0], sizes = [2, 1, 8], strides = [1, 1, 1]} : vector<2x8x8xf32> to vector<2x1x8xf32>
      %212 = vector.shape_cast %210 : vector<8x1xf32> to vector<1x8x1xf32>
      %213 = vector.broadcast %212 : vector<1x8x1xf32> to vector<2x8x8xf32>
      %214 = vector.broadcast %211 : vector<2x1x8xf32> to vector<2x8x8xf32>
      %215 = arith.mulf %213, %214 : vector<2x8x8xf32>
      %216 = arith.addf %208, %215 : vector<2x8x8xf32>
      %c0_83 = arith.constant 0 : index
      %c0_84 = arith.constant 0 : index
      %217 = vector.load %arg11[%c0_83, %c0_84] : memref<8x1xf32, #tpu.memory_space<vmem>>, vector<8x1xf32>
      %218 = vector.shape_cast %217 : vector<8x1xf32> to vector<1x8x1xf32>
      %219 = vector.broadcast %218 : vector<1x8x1xf32> to vector<2x8x8xf32>
      %220 = arith.addf %216, %219 : vector<2x8x8xf32>
      %c0_85 = arith.constant 0 : index
      %c0_86 = arith.constant 0 : index
      %221 = vector.load %arg12[%c0_85, %c0_86] : memref<8x1xf32, #tpu.memory_space<vmem>>, vector<8x1xf32>
      %222 = vector.broadcast %31 : f32 to vector<8x1xf32>
      %223 = arith.mulf %222, %221 : vector<8x1xf32>
      %224 = vector.shape_cast %223 : vector<8x1xf32> to vector<1x8x1xf32>
      %225 = vector.broadcast %224 : vector<1x8x1xf32> to vector<2x8x8xf32>
      %226 = arith.addf %220, %225 : vector<2x8x8xf32>
      %227 = vector.broadcast %27 : f32 to vector<2x8x8xf32>
      %228 = arith.mulf %227, %136 : vector<2x8x8xf32>
      %229 = vector.broadcast %29 : f32 to vector<2x8x8xf32>
      %230 = arith.mulf %229, %226 : vector<2x8x8xf32>
      %231 = arith.addf %228, %230 : vector<2x8x8xf32>
      %cst_87 = arith.constant -1.000000e+00 : f32
      %cst_88 = arith.constant 1.000000e+00 : f32
      %232 = vector.broadcast %cst_87 : f32 to vector<2x8x8xf32>
      %233 = arith.maximumf %232, %231 : vector<2x8x8xf32>
      %234 = vector.broadcast %cst_88 : f32 to vector<2x8x8xf32>
      %235 = arith.minimumf %234, %233 : vector<2x8x8xf32>
      %236 = arith.subf %136, %235 : vector<2x8x8xf32>
      %237 = vector.broadcast %33 : f32 to vector<2x8x8xf32>
      %238 = arith.mulf %236, %237 : vector<2x8x8xf32>
      %239 = arith.addf %133, %238 : vector<2x8x8xf32>
      %240 = vector.broadcast %23 : f32 to vector<2x8x8xf32>
      %241 = arith.mulf %240, %239 : vector<2x8x8xf32>
      %242 = arith.addf %46, %241 : vector<2x8x8xf32>
      %243 = arith.addf %242, %141 : vector<2x8x8xf32>
      %c0_89 = arith.constant 0 : index
      %c0_90 = arith.constant 0 : index
      %c0_91 = arith.constant 0 : index
      %244 = vector.load %arg15[%c0_89, %c0_90, %c0_91] : memref<2x8x8xf32, #tpu.memory_space<vmem>>, vector<2x8x8xf32>
      tpu.vector_store %arg15[%c0_89, %c0_90, %c0_91], %243 {strides = array<i32>} : memref<2x8x8xf32, #tpu.memory_space<vmem>>, vector<2x8x8xf32>,
    } else {
    }
    %c5_i32 = arith.constant 5 : i32
    %149 = arith.cmpi eq, %arg2, %c5_i32 : i32
    %150 = arith.extui %149 : i1 to i32
    %c0_i32_58 = arith.constant 0 : i32
    %151 = arith.cmpi ne, %150, %c0_i32_58 : i32
    scf.if %151 {
      %c1_59 = arith.constant 1 : index
      %c0_60 = arith.constant 0 : index
      %c0_61 = arith.constant 0 : index
      %152 = vector.load %arg15[%c1_59, %c0_60, %c0_61] : memref<2x8x8xf32, #tpu.memory_space<vmem>>, vector<1x8x8xf32>
      %153 = vector.shape_cast %152 : vector<1x8x8xf32> to vector<8x8xf32>
      %cst_62 = arith.constant -1.000000e+00 : f32
      %cst_63 = arith.constant 1.000000e+00 : f32
      %154 = vector.broadcast %cst_62 : f32 to vector<8x8xf32>
      %155 = arith.maximumf %154, %153 : vector<8x8xf32>
      %156 = vector.broadcast %cst_63 : f32 to vector<8x8xf32>
      %157 = arith.minimumf %156, %155 : vector<8x8xf32>
      %c0_64 = arith.constant 0 : index
      %c0_65 = arith.constant 0 : index
      %c0_66 = arith.constant 0 : index
      %c0_67 = arith.constant 0 : index
      %158 = vector.load %arg13[%c0_64, %c0_65, %c0_66, %c0_67] : memref<1x1x8x8xf32, #tpu.memory_space<vmem>>, vector<1x1x8x8xf32>
      %159 = vector.shape_cast %158 : vector<1x1x8x8xf32> to vector<8x8xf32>
      %160 = vector.shape_cast %157 : vector<8x8xf32> to vector<1x1x8x8xf32>
      tpu.vector_store %arg13[%c0_64, %c0_65, %c0_66, %c0_67], %160 {strides = array<i32>} : memref<1x1x8x8xf32, #tpu.memory_space<vmem>>, vector<1x1x8x8xf32>,
      %c0_68 = arith.constant 0 : index
      %c0_69 = arith.constant 0 : index
      %161 = vector.load %arg14[%c0_68, %c0_69] : memref<8x8xf32, #tpu.memory_space<vmem>>, vector<8x8xf32>
      tpu.vector_store %arg14[%c0_68, %c0_69], %157 {strides = array<i32>} : memref<8x8xf32, #tpu.memory_space<vmem>>, vector<8x8xf32>,
    } else {
    }
    return
  }
  func.func @transform_0(%arg0: i32, %arg1: i32, %arg2: i32) -> i32 {
    %c0_i32 = arith.constant 0 : i32
    %c0_i32_0 = arith.constant 0 : i32
    return %c0_i32 : i32
  }
  func.func @transform_1(%arg0: i32, %arg1: i32, %arg2: i32) -> (i32, i32) {
    %c0_i32 = arith.constant 0 : i32
    %c0_i32_0 = arith.constant 0 : i32
    %c0_i32_1 = arith.constant 0 : i32
    return %c0_i32, %c0_i32_0 : i32, i32
  }
  func.func @transform_2(%arg0: i32, %arg1: i32, %arg2: i32) -> i32 {
    %c0_i32 = arith.constant 0 : i32
    %c0_i32_0 = arith.constant 0 : i32
    return %c0_i32 : i32
  }
  func.func @transform_3(%arg0: i32, %arg1: i32, %arg2: i32) -> (i32, i32, i32, i32) {
    %c1_i32 = arith.constant 1 : i32
    %c0_i32 = arith.constant 0 : i32
    %c0_i32_0 = arith.constant 0 : i32
    %c0_i32_1 = arith.constant 0 : i32
    return %arg0, %c1_i32, %c0_i32, %c0_i32_0 : i32, i32, i32, i32
  }
  func.func @transform_4(%arg0: i32, %arg1: i32, %arg2: i32) -> (i32, i32, i32, i32, i32) {
    %c0_i32 = arith.constant 0 : i32
    %c0_i32_0 = arith.constant 0 : i32
    %c0_i32_1 = arith.constant 0 : i32
    %c0_i32_2 = arith.constant 0 : i32
    return %arg1, %arg0, %c0_i32, %c0_i32_0, %c0_i32_1 : i32, i32, i32, i32, i32
  }
  func.func @transform_5(%arg0: i32, %arg1: i32, %arg2: i32) -> (i32, i32, i32, i32, i32, i32) {
    %c0_i32 = arith.constant 0 : i32
    %c0_i32_0 = arith.constant 0 : i32
    %c0_i32_1 = arith.constant 0 : i32
    %c0_i32_2 = arith.constant 0 : i32
    return %arg1, %arg2, %arg0, %c0_i32, %c0_i32_0, %c0_i32_1 : i32, i32, i32, i32, i32, i32
  }
  func.func @transform_6(%arg0: i32, %arg1: i32, %arg2: i32) -> (i32, i32, i32, i32, i32, i32) {
    %c0_i32 = arith.constant 0 : i32
    %c0_i32_0 = arith.constant 0 : i32
    %c0_i32_1 = arith.constant 0 : i32
    %c0_i32_2 = arith.constant 0 : i32
    return %arg1, %arg2, %arg0, %c0_i32, %c0_i32_0, %c0_i32_1 : i32, i32, i32, i32, i32, i32
  }
  func.func @transform_7(%arg0: i32, %arg1: i32, %arg2: i32) -> (i32, i32, i32) {
    %c0_i32 = arith.constant 0 : i32
    %c0_i32_0 = arith.constant 0 : i32
    %c0_i32_1 = arith.constant 0 : i32
    %c0_i32_2 = arith.constant 0 : i32
    return %c0_i32, %c0_i32_0, %c0_i32_1 : i32, i32, i32
  }
  func.func @transform_8(%arg0: i32, %arg1: i32, %arg2: i32) -> (i32, i32) {
    %c0_i32 = arith.constant 0 : i32
    %c0_i32_0 = arith.constant 0 : i32
    %c0_i32_1 = arith.constant 0 : i32
    return %c0_i32, %c0_i32_0 : i32, i32
  }
  func.func @transform_9(%arg0: i32, %arg1: i32, %arg2: i32) -> (i32, i32) {
    %c0_i32 = arith.constant 0 : i32
    %c0_i32_0 = arith.constant 0 : i32
    %c0_i32_1 = arith.constant 0 : i32
    return %c0_i32, %c0_i32_0 : i32, i32
  }
  func.func @transform_10(%arg0: i32, %arg1: i32, %arg2: i32) -> (i32, i32, i32, i32) {
    %c0_i32 = arith.constant 0 : i32
    %c0_i32_0 = arith.constant 0 : i32
    %c0_i32_1 = arith.constant 0 : i32
    return %arg1, %arg0, %c0_i32, %c0_i32_0 : i32, i32, i32, i32
  }
}

</mosaic_0001>

<llo_original>
// kernel: tpu_custom_call.1
$region0: #{tpu_custom_call.1}
  #allocation0 [shape = 'u32[]', space=smem, size = 0x4, offset = 0x4, fixed_abs, tag = 'smem constant byte address 0x4 - core index']
  #allocation1 [shape = 'u32[144,128]{1,0:T(1,128)}', space=vmem, size = 0x12000, scoped, tag = 'internal scratch']
  #allocation2 [shape = 'f32[8,8]{1,0:T(8,128)}', space=vmem, size = 0x1000, scoped, tag = 'scratch operand']
  #allocation3 [shape = 'f32[2,8,8]{2,1,0:T(8,128)}', space=vmem, size = 0x2000, scoped, tag = 'scratch operand']
  #allocation4 [shape = 'f32[1]{0:T(128)S(6)}', space=smem, size = 0x200, scoped, tag = 'scoped memory for tpu_custom_call.1']
  %s0 = inlined_call_operand.<no memory space> [shape: f32[1], index: 0, kind: input, shape index: {}]
  %s1 = inlined_call_operand.vmem [shape: f32[6,14], index: 1, kind: input, shape index: {}]
  %s2 = inlined_call_operand.hbm [shape: s32[6], index: 2, kind: input, shape index: {}]
  %s3 = inlined_call_operand.hbm [shape: f32[2,2,8,8], index: 3, kind: input, shape index: {}]
  %s4 = inlined_call_operand.vmem [shape: f32[3,2,2,8,8], index: 4, kind: input, shape index: {}]
  %s5 = inlined_call_operand.hbm [shape: bf16[3,6,2,2,8,8], index: 5, kind: input, shape index: {}]
  %s6 = inlined_call_operand.hbm [shape: bf16[3,6,2,2,8,8], index: 6, kind: input, shape index: {}]
  %s7 = inlined_call_operand.vmem [shape: f32[8,8,1], index: 7, kind: input, shape index: {}]
  %s8 = inlined_call_operand.vmem [shape: f32[8,1], index: 8, kind: input, shape index: {}]
  %s9 = inlined_call_operand.vmem [shape: f32[8,1], index: 9, kind: input, shape index: {}]
  %s10 = inlined_call_operand.hbm [shape: f32[3,2,8,8], index: 10, kind: output, shape index: {}]
  %s11 = sld [smem:[#allocation0]]
  $region109: #{tpu_custom_call.1} parent=0
    _
  %s13 = ssub.s32 1, %s11
  %s14 = scalar_select 0, %s13, %s11
  %15 = sst [smem:[#allocation4]] %s0
  $region1: #{tpu_custom_call.1} parent=0
    #allocation5 [shape = 'u8[4096]{0}', space=smem, size = 0x1000, scoped, tag = 'input window, operand 1, single buffered']
    #allocation6 [shape = 's32[2]{0}', space=sflag, size = 0x8, scoped, tag = 'scoped memory for tpu_custom_call.1']
    #allocation7 [shape = 's32[2]{0}', space=sflag, size = 0x8, scoped, tag = 'scoped memory for tpu_custom_call.1']
    #allocation8 [shape = 's32[2]{0}', space=sflag, size = 0x8, scoped, tag = 'scoped memory for tpu_custom_call.1']
    #allocation9 [shape = 's32[2]{0}', space=sflag, size = 0x8, scoped, tag = 'scoped memory for tpu_custom_call.1']
    #allocation10 [shape = 'u8[512]{0}', space=smem, size = 0x200, scoped, tag = 'input window, operand 2, single buffered']
    #allocation11 [shape = 'u8[8192]{0}', space=vmem, size = 0x2000, scoped, tag = 'input window, operand 3']
    #allocation12 [shape = 'u8[8192]{0}', space=vmem, size = 0x2000, scoped, tag = 'input window, operand 5']
    #allocation13 [shape = 's32[2]{0}', space=sflag, size = 0x8, scoped, tag = 'scoped memory for tpu_custom_call.1']
    #allocation14 [shape = 'u8[8192]{0}', space=vmem, size = 0x2000, scoped, tag = 'input window, operand 6']
    #allocation15 [shape = 'u8[8192]{0}', space=vmem, size = 0x2000, scoped, tag = 'output window, operand 0']
    %16 = vsyncpa [#allocation9], 0
    %17 = vsyncpa [#allocation8], 0
    %18 = vsyncpa [#allocation6], 0
    %s19 = scalar_lea.sflag [#allocation6], 1
    %20 = vsyncpa %s19, 0
    %21 = vsyncpa [#allocation13], 0
    %s22 = scalar_lea.sflag [#allocation13], 1
    %23 = vsyncpa %s22, 0
    %24 = vsyncpa [#allocation7], 0
    %s25 = scalar_lea.sflag [#allocation7], 1
    %26 = vsyncpa %s25, 0
    loop: start=0, step=1, limit=38
    $region2: #{tpu_custom_call.1} parent=1 // loop_pre_header
      _
    $region3: #{tpu_custom_call.1} parent=1 // loop_header
      %s28 = sphi 0, %s32
      %p29 = scmp.ge.s32.totalorder %s28, 38
      %s35 = sphi 0, %s54
      %s36 = sphi 0, %s50
      %s37 = sphi 0, %s46
      %s38 = sphi 0, %s35
      %s39 = sphi 0, %s36
      %s40 = sphi 0, %s37
      %s41 = sphi 0, %s38
      %s42 = sphi 0, %s39
      %s43 = sphi 0, %s40
      %s55 = sphi 0, %s55
      %s57 = sphi 0, %s55
      %s58 = sphi 0, %s57
      %s72 = sphi 0, %s58
      %s76 = sphi 0, %s76
      %s78 = sphi 0, %s76
      %s79 = sphi 0, %s78
      %s93 = sphi 0, %s79
      %s97 = sphi 0, %s97
      %s99 = sphi 0, %s97
      %s100 = sphi 0, %s99
      %s114 = sphi 0, %s100
      %s120 = sphi 0, %s122
      %s123 = sphi 0, %s120
      %s124 = sphi 0, %s123
      %s140 = sphi 0, %s124
      %s148 = sphi 0, %s150
      %s151 = sphi 0, %s148
      %s152 = sphi 0, %s151
      %s168 = sphi 0, %s152
      %s178 = sphi 0, %s180
      %s181 = sphi 0, %s178
      %s182 = sphi 0, %s181
      %s198 = sphi 0, %s182
      %s208 = sphi 0, %s210
      %s211 = sphi 0, %s208
      %s212 = sphi 0, %s211
      %s228 = sphi 0, %s212
      %s232 = sphi 0, %s232
      %s234 = sphi 0, %s232
      %s235 = sphi 0, %s234
      %s249 = sphi 0, %s235
      %s253 = sphi 0, %s253
      %s255 = sphi 0, %s253
      %s256 = sphi 0, %s255
      %s270 = sphi 0, %s256
      %s274 = sphi 0, %s274
      %s276 = sphi 0, %s274
      %s277 = sphi 0, %s276
      %s291 = sphi 0, %s277
      %s299 = sphi 0, %s301
      %s302 = sphi 0, %s299
      %s303 = sphi 0, %s302
      %s319 = sphi 0, %s303
    $region4: #{tpu_custom_call.1} parent=1 // loop_header_branch
      %31 = sbr.rel (%p29) target = $region8
    $region5: #{tpu_custom_call.1} parent=1 // loop_body
      %s33 = ssub.s32 %s28, 1
      %s34 = ssub.s32 %s28, 2
      %s44 = sadd.s32 1, %s37
      %p45 = scmp.ge.s32.totalorder %s44, 6
      %s46 = scalar_select %p45, 0, %s44
      %s47 = sadd.s32 1, %s36
      %s48 = scalar_select %p45, %s47, %s36
      %p49 = scmp.ge.s32.totalorder %s48, 3
      %s50 = scalar_select %p49, 0, %s48
      %s51 = sadd.s32 1, %s35
      %s52 = scalar_select %p49, %s51, %s35
      %p53 = scmp.ge.s32.totalorder %s52, 2
      %s54 = scalar_select %p53, 0, %s52
      %s56 = sadd.s32 %s55, 1
      %p59 = scmp.eq.s32.totalorder %s28, 35
      %p60 = scmp.ne.s32.totalorder %s55, %s57
      %p61 = scmp.eq.s32.totalorder %s28, 0
      %p62 = por %p60, %p61
      %p63 = scmp.ne.s32.totalorder %s55, %s57
      %p64 = scmp.eq.s32.totalorder %s33, 35
      %p65 = por %p63, %p64
      %p66 = scmp.ne.s32.totalorder %s57, %s58
      %p67 = scmp.eq.s32.totalorder %s33, 0
      %p68 = por %p66, %p67
      %p69 = scmp.ne.s32.totalorder %s57, %s58
      %p70 = scmp.eq.s32.totalorder %s34, 35
      %p71 = por %p69, %p70
      %p73 = scmp.ne.s32.totalorder %s58, %s72
      %p74 = scmp.eq.s32.totalorder %s34, 0
      %p75 = por %p73, %p74
      %s77 = sadd.s32 %s76, 1
      %p80 = scmp.eq.s32.totalorder %s28, 35
      %p81 = scmp.ne.s32.totalorder %s76, %s78
      %p82 = scmp.eq.s32.totalorder %s28, 0
      %p83 = por %p81, %p82
      %p84 = scmp.ne.s32.totalorder %s76, %s78
      %p85 = scmp.eq.s32.totalorder %s33, 35
      %p86 = por %p84, %p85
      %p87 = scmp.ne.s32.totalorder %s78, %s79
      %p88 = scmp.eq.s32.totalorder %s33, 0
      %p89 = por %p87, %p88
      %p90 = scmp.ne.s32.totalorder %s78, %s79
      %p91 = scmp.eq.s32.totalorder %s34, 35
      %p92 = por %p90, %p91
      %p94 = scmp.ne.s32.totalorder %s79, %s93
      %p95 = scmp.eq.s32.totalorder %s34, 0
      %p96 = por %p94, %p95
      %s98 = sadd.s32 %s97, 1
      %p101 = scmp.eq.s32.totalorder %s28, 35
      %p102 = scmp.ne.s32.totalorder %s97, %s99
      %p103 = scmp.eq.s32.totalorder %s28, 0
      %p104 = por %p102, %p103
      %p105 = scmp.ne.s32.totalorder %s97, %s99
      %p106 = scmp.eq.s32.totalorder %s33, 35
      %p107 = por %p105, %p106
      %p108 = scmp.ne.s32.totalorder %s99, %s100
      %p109 = scmp.eq.s32.totalorder %s33, 0
      %p110 = por %p108, %p109
      %p111 = scmp.ne.s32.totalorder %s99, %s100
      %p112 = scmp.eq.s32.totalorder %s34, 35
      %p113 = por %p111, %p112
      %p115 = scmp.ne.s32.totalorder %s100, %s114
      %p116 = scmp.eq.s32.totalorder %s34, 0
      %p117 = por %p115, %p116
      %s118 = ssub.s32 %s35, %s54
      %p119 = scmp.eq.s32.totalorder %s118, 0
      %s121 = sadd.s32 %s120, 1
      %s122 = scalar_select %p119, %s120, %s121
      %p125 = pneg %p119
      %p126 = scmp.eq.s32.totalorder %s28, 35
      %p127 = por %p125, %p126
      %p128 = scmp.ne.s32.totalorder %s120, %s123
      %p129 = scmp.eq.s32.totalorder %s28, 0
      %p130 = por %p128, %p129
      %p131 = scmp.ne.s32.totalorder %s120, %s123
      %p132 = scmp.eq.s32.totalorder %s33, 35
      %p133 = por %p131, %p132
      %p134 = scmp.ne.s32.totalorder %s123, %s124
      %p135 = scmp.eq.s32.totalorder %s33, 0
      %p136 = por %p134, %p135
      %p137 = scmp.ne.s32.totalorder %s123, %s124
      %p138 = scmp.eq.s32.totalorder %s34, 35
      %p139 = por %p137, %p138
      %p141 = scmp.ne.s32.totalorder %s124, %s140
      %p142 = scmp.eq.s32.totalorder %s34, 0
      %p143 = por %p141, %p142
      %s144 = ssub.s32 %s36, %s50
      %s145 = ssub.s32 %s35, %s54
      %s146 = sor.u32 %s144, %s145
      %p147 = scmp.eq.s32.totalorder %s146, 0
      %s149 = sadd.s32 %s148, 1
      %s150 = scalar_select %p147, %s148, %s149
      %p153 = pneg %p147
      %p154 = scmp.eq.s32.totalorder %s28, 35
      %p155 = por %p153, %p154
      %p156 = scmp.ne.s32.totalorder %s148, %s151
      %p157 = scmp.eq.s32.totalorder %s28, 0
      %p158 = por %p156, %p157
      %p159 = scmp.ne.s32.totalorder %s148, %s151
      %p160 = scmp.eq.s32.totalorder %s33, 35
      %p161 = por %p159, %p160
      %p162 = scmp.ne.s32.totalorder %s151, %s152
      %p163 = scmp.eq.s32.totalorder %s33, 0
      %p164 = por %p162, %p163
      %p165 = scmp.ne.s32.totalorder %s151, %s152
      %p166 = scmp.eq.s32.totalorder %s34, 35
      %p167 = por %p165, %p166
      %p169 = scmp.ne.s32.totalorder %s152, %s168
      %p170 = scmp.eq.s32.totalorder %s34, 0
      %p171 = por %p169, %p170
      %s172 = ssub.s32 %s36, %s50
      %s173 = ssub.s32 %s37, %s46
      %s174 = sor.u32 %s172, %s173
      %s175 = ssub.s32 %s35, %s54
      %s176 = sor.u32 %s174, %s175
      %p177 = scmp.eq.s32.totalorder %s176, 0
      %s179 = sadd.s32 %s178, 1
      %s180 = scalar_select %p177, %s178, %s179
      %p183 = pneg %p177
      %p184 = scmp.eq.s32.totalorder %s28, 35
      %p185 = por %p183, %p184
      %p186 = scmp.ne.s32.totalorder %s178, %s181
      %p187 = scmp.eq.s32.totalorder %s28, 0
      %p188 = por %p186, %p187
      %p189 = scmp.ne.s32.totalorder %s178, %s181
      %p190 = scmp.eq.s32.totalorder %s33, 35
      %p191 = por %p189, %p190
      %p192 = scmp.ne.s32.totalorder %s181, %s182
      %p193 = scmp.eq.s32.totalorder %s33, 0
      %p194 = por %p192, %p193
      %p195 = scmp.ne.s32.totalorder %s181, %s182
      %p196 = scmp.eq.s32.totalorder %s34, 35
      %p197 = por %p195, %p196
      %p199 = scmp.ne.s32.totalorder %s182, %s198
      %p200 = scmp.eq.s32.totalorder %s34, 0
      %p201 = por %p199, %p200
      %s202 = ssub.s32 %s36, %s50
      %s203 = ssub.s32 %s37, %s46
      %s204 = sor.u32 %s202, %s203
      %s205 = ssub.s32 %s35, %s54
      %s206 = sor.u32 %s204, %s205
      %p207 = scmp.eq.s32.totalorder %s206, 0
      %s209 = sadd.s32 %s208, 1
      %s210 = scalar_select %p207, %s208, %s209
      %p213 = pneg %p207
      %p214 = scmp.eq.s32.totalorder %s28, 35
      %p215 = por %p213, %p214
      %p216 = scmp.ne.s32.totalorder %s208, %s211
      %p217 = scmp.eq.s32.totalorder %s28, 0
      %p218 = por %p216, %p217
      %p219 = scmp.ne.s32.totalorder %s208, %s211
      %p220 = scmp.eq.s32.totalorder %s33, 35
      %p221 = por %p219, %p220
      %p222 = scmp.ne.s32.totalorder %s211, %s212
      %p223 = scmp.eq.s32.totalorder %s33, 0
      %p224 = por %p222, %p223
      %p225 = scmp.ne.s32.totalorder %s211, %s212
      %p226 = scmp.eq.s32.totalorder %s34, 35
      %p227 = por %p225, %p226
      %p229 = scmp.ne.s32.totalorder %s212, %s228
      %p230 = scmp.eq.s32.totalorder %s34, 0
      %p231 = por %p229, %p230
      %s233 = sadd.s32 %s232, 1
      %p236 = scmp.eq.s32.totalorder %s28, 35
      %p237 = scmp.ne.s32.totalorder %s232, %s234
      %p238 = scmp.eq.s32.totalorder %s28, 0
      %p239 = por %p237, %p238
      %p240 = scmp.ne.s32.totalorder %s232, %s234
      %p241 = scmp.eq.s32.totalorder %s33, 35
      %p242 = por %p240, %p241
      %p243 = scmp.ne.s32.totalorder %s234, %s235
      %p244 = scmp.eq.s32.totalorder %s33, 0
      %p245 = por %p243, %p244
      %p246 = scmp.ne.s32.totalorder %s234, %s235
      %p247 = scmp.eq.s32.totalorder %s34, 35
      %p248 = por %p246, %p247
      %p250 = scmp.ne.s32.totalorder %s235, %s249
      %p251 = scmp.eq.s32.totalorder %s34, 0
      %p252 = por %p250, %p251
      %s254 = sadd.s32 %s253, 1
      %p257 = scmp.eq.s32.totalorder %s28, 35
      %p258 = scmp.ne.s32.totalorder %s253, %s255
      %p259 = scmp.eq.s32.totalorder %s28, 0
      %p260 = por %p258, %p259
      %p261 = scmp.ne.s32.totalorder %s253, %s255
      %p262 = scmp.eq.s32.totalorder %s33, 35
      %p263 = por %p261, %p262
      %p264 = scmp.ne.s32.totalorder %s255, %s256
      %p265 = scmp.eq.s32.totalorder %s33, 0
      %p266 = por %p264, %p265
      %p267 = scmp.ne.s32.totalorder %s255, %s256
      %p268 = scmp.eq.s32.totalorder %s34, 35
      %p269 = por %p267, %p268
      %p271 = scmp.ne.s32.totalorder %s256, %s270
      %p272 = scmp.eq.s32.totalorder %s34, 0
      %p273 = por %p271, %p272
      %s275 = sadd.s32 %s274, 1
      %p278 = scmp.eq.s32.totalorder %s28, 35
      %p279 = scmp.ne.s32.totalorder %s274, %s276
      %p280 = scmp.eq.s32.totalorder %s28, 0
      %p281 = por %p279, %p280
      %p282 = scmp.ne.s32.totalorder %s274, %s276
      %p283 = scmp.eq.s32.totalorder %s33, 35
      %p284 = por %p282, %p283
      %p285 = scmp.ne.s32.totalorder %s276, %s277
      %p286 = scmp.eq.s32.totalorder %s33, 0
      %p287 = por %p285, %p286
      %p288 = scmp.ne.s32.totalorder %s276, %s277
      %p289 = scmp.eq.s32.totalorder %s34, 35
      %p290 = por %p288, %p289
      %p292 = scmp.ne.s32.totalorder %s277, %s291
      %p293 = scmp.eq.s32.totalorder %s34, 0
      %p294 = por %p292, %p293
      %s295 = ssub.s32 %s36, %s50
      %s296 = ssub.s32 %s35, %s54
      %s297 = sor.u32 %s295, %s296
      %p298 = scmp.eq.s32.totalorder %s297, 0
      %s300 = sadd.s32 %s299, 1
      %s301 = scalar_select %p298, %s299, %s300
      %p304 = pneg %p298
      %p305 = scmp.eq.s32.totalorder %s28, 35
      %p306 = por %p304, %p305
      %p307 = scmp.ne.s32.totalorder %s299, %s302
      %p308 = scmp.eq.s32.totalorder %s28, 0
      %p309 = por %p307, %p308
      %p310 = scmp.ne.s32.totalorder %s299, %s302
      %p311 = scmp.eq.s32.totalorder %s33, 35
      %p312 = por %p310, %p311
      %p313 = scmp.ne.s32.totalorder %s302, %s303
      %p314 = scmp.eq.s32.totalorder %s33, 0
      %p315 = por %p313, %p314
      %p316 = scmp.ne.s32.totalorder %s302, %s303
      %p317 = scmp.eq.s32.totalorder %s34, 35
      %p318 = por %p316, %p317
      %p320 = scmp.ne.s32.totalorder %s303, %s319
      %p321 = scmp.eq.s32.totalorder %s34, 0
      %p322 = por %p320, %p321
      %p323 = scmp.le.s32.totalorder 1, %s28
      %p324 = scmp.lt.s32.totalorder %s28, 37
      %p325 = pnand %p323, %p324
      %p326 = pneg %p325
      // Predicated region
      $region9: #{tpu_custom_call.1} parent=5 // pred_check
        _
      $region10: #{tpu_custom_call.1} parent=5 // pred_check_branch
        %328 = sbr.rel (%p325) target = $region12
      $region11: #{tpu_custom_call.1} parent=5 // pred_region
        %s329 = ssub.s32 %s28, 1
        // Predicated region
        $region13: #{tpu_custom_call.1} parent=11 // pred_check
          %p330 = pneg %p68
        $region14: #{tpu_custom_call.1} parent=11 // pred_check_branch
          %332 = sbr.rel (%p330) target = $region16
        $region15: #{tpu_custom_call.1} parent=11 // pred_region
          _
        $region16: #{tpu_custom_call.1} parent=11 // pred_fallthru
          _
        // Predicated region
        $region17: #{tpu_custom_call.1} parent=11 // pred_check
          %p333 = pneg %p89
        $region18: #{tpu_custom_call.1} parent=11 // pred_check_branch
          %335 = sbr.rel (%p333) target = $region20
        $region19: #{tpu_custom_call.1} parent=11 // pred_region
          %s337 = ssub.s32 128, 128
          %338 = vsyncadd [#allocation9], %s337
          %s340 = sshll.u32 %s1, 4
          %s341 = int_to_ptr.vmem [resolvable:$true] %s340
          %343 = dma.vmem_to_smem %s341, 128, [#allocation5], [#allocation9]
        $region20: #{tpu_custom_call.1} parent=11 // pred_fallthru
          _
        // Predicated region
        $region21: #{tpu_custom_call.1} parent=11 // pred_check
          %p344 = pneg %p110
        $region22: #{tpu_custom_call.1} parent=11 // pred_check_branch
          %346 = sbr.rel (%p344) target = $region24
        $region23: #{tpu_custom_call.1} parent=11 // pred_region
          %s348 = ssub.s32 16, 16
          %349 = vsyncadd [#allocation8], %s348
          %352 = dma.hbm_to_smem %s2, 16, [#allocation10], [#allocation8]
        $region24: #{tpu_custom_call.1} parent=11 // pred_fallthru
          _
        // Predicated region
        $region25: #{tpu_custom_call.1} parent=11 // pred_check
          %p353 = pneg %p245
        $region26: #{tpu_custom_call.1} parent=11 // pred_check_branch
          %355 = sbr.rel (%p353) target = $region28
        $region27: #{tpu_custom_call.1} parent=11 // pred_region
          _
        $region28: #{tpu_custom_call.1} parent=11 // pred_fallthru
          _
        // Predicated region
        $region29: #{tpu_custom_call.1} parent=11 // pred_check
          %p356 = pneg %p266
        $region30: #{tpu_custom_call.1} parent=11 // pred_check_branch
          %358 = sbr.rel (%p356) target = $region32
        $region31: #{tpu_custom_call.1} parent=11 // pred_region
          _
        $region32: #{tpu_custom_call.1} parent=11 // pred_fallthru
          _
        // Predicated region
        $region33: #{tpu_custom_call.1} parent=11 // pred_check
          %p359 = pneg %p287
        $region34: #{tpu_custom_call.1} parent=11 // pred_check_branch
          %361 = sbr.rel (%p359) target = $region36
        $region35: #{tpu_custom_call.1} parent=11 // pred_region
          _
        $region36: #{tpu_custom_call.1} parent=11 // pred_fallthru
          _
      $region12: #{tpu_custom_call.1} parent=5 // pred_fallthru
        _
      %p362 = scmp.lt.s32.totalorder %s28, 36
      // Predicated region
      $region37: #{tpu_custom_call.1} parent=5 // pred_check
        %p363 = pneg %p362
      $region38: #{tpu_custom_call.1} parent=5 // pred_check_branch
        %365 = sbr.rel (%p363) target = $region40
      $region39: #{tpu_custom_call.1} parent=5 // pred_region
        // Predicated region
        $region41: #{tpu_custom_call.1} parent=39 // pred_check
          %p366 = pneg %p130
        $region42: #{tpu_custom_call.1} parent=39 // pred_check_branch
          %368 = sbr.rel (%p366) target = $region44
        $region43: #{tpu_custom_call.1} parent=39 // pred_region
          %s369 = sand.u32 %s120, 1
          %s370 = scalar_lea.sflag [#allocation6], %s369
          %s371 = sand.u32 %s120, 1
          %s372 = smul.addr %s371, 8
          %s373 = scalar_lea.vmem [#allocation11], %s372
          %s375 = ssub.s32 128, 128
          %376 = vsyncadd %s370, %s375
          %s377 = smul.addr %s35, 2
          %s378 = sadd.s32 1, %s377
          %s379 = smul.addr %s378, 128
          %s380 = scalar_lea.hbm %s3, %s379
          %s382 = sshll.u32 %s373, 4
          %s383 = int_to_ptr.vmem [resolvable:$true] %s382
          %385 = dma.hbm_to_vmem [thread:$0]  %s380, 128, %s383, %s370
        $region44: #{tpu_custom_call.1} parent=39 // pred_fallthru
          _
        // Predicated region
        $region45: #{tpu_custom_call.1} parent=39 // pred_check
          %p386 = pneg %p158
        $region46: #{tpu_custom_call.1} parent=39 // pred_check_branch
          %388 = sbr.rel (%p386) target = $region48
        $region47: #{tpu_custom_call.1} parent=39 // pred_region
          %p389 = scmp.lt.s32.totalorder %s36, 2
          %s390 = scalar_select %p389, %s36, 2
          %p391 = scmp.lt.s32.totalorder %s35, 1
          %s392 = scalar_select %p391, %s35, 1
          %s393 = smul.addr %s392, 2
          %s394 = smul.addr %s390, 4
          %s395 = sadd.s32 %s393, %s394
          %s396 = smul.addr %s395, 8
          %s397 = scalar_lea.vmem %s4, %s396
        $region48: #{tpu_custom_call.1} parent=39 // pred_fallthru
          _
        // Predicated region
        $region49: #{tpu_custom_call.1} parent=39 // pred_check
          %p398 = pneg %p188
        $region50: #{tpu_custom_call.1} parent=39 // pred_check_branch
          %400 = sbr.rel (%p398) target = $region52
        $region51: #{tpu_custom_call.1} parent=39 // pred_region
          %s401 = sand.u32 %s28, 1
          %s402 = scalar_lea.sflag [#allocation13], %s401
          %s403 = sand.u32 %s178, 1
          %s404 = smul.addr %s403, 8
          %s405 = scalar_lea.vmem [#allocation12], %s404
          %s407 = ssub.s32 128, 128
          %408 = vsyncadd %s402, %s407
          %s409 = smul.addr %s35, 2
          %s410 = smul.addr %s37, 4
          %s411 = sadd.s32 %s409, %s410
          %s412 = smul.addr %s36, 24
          %s413 = sadd.s32 %s411, %s412
          %s414 = smul.addr %s413, 64
          %s415 = scalar_lea.hbm %s5, %s414
          %s416 = sshll.u32 %s405, 4
          %s417 = int_to_ptr.vmem [resolvable:$true] %s416
          %422 = dma.hbm_to_vmem [thread:$0]  %s415, 128, %s417, %s402, 64, 64, 4
        $region52: #{tpu_custom_call.1} parent=39 // pred_fallthru
          _
        // Predicated region
        $region53: #{tpu_custom_call.1} parent=39 // pred_check
          %p423 = pneg %p218
        $region54: #{tpu_custom_call.1} parent=39 // pred_check_branch
          %425 = sbr.rel (%p423) target = $region56
        $region55: #{tpu_custom_call.1} parent=39 // pred_region
          %s426 = sand.u32 %s28, 1
          %s427 = scalar_lea.sflag [#allocation13], %s426
          %s428 = sand.u32 %s208, 1
          %s429 = smul.addr %s428, 8
          %s430 = scalar_lea.vmem [#allocation14], %s429
          %s432 = ssub.s32 128, 128
          %433 = vsyncadd %s427, %s432
          %s434 = smul.addr %s35, 2
          %s435 = smul.addr %s37, 4
          %s436 = sadd.s32 %s434, %s435
          %s437 = smul.addr %s36, 24
          %s438 = sadd.s32 %s436, %s437
          %s439 = smul.addr %s438, 64
          %s440 = scalar_lea.hbm %s6, %s439
          %s441 = sshll.u32 %s430, 4
          %s442 = int_to_ptr.vmem [resolvable:$true] %s441
          %447 = dma.hbm_to_vmem [thread:$0]  %s440, 128, %s442, %s427, 64, 64, 4
        $region56: #{tpu_custom_call.1} parent=39 // pred_fallthru
          _
      $region40: #{tpu_custom_call.1} parent=5 // pred_fallthru
        _
      %p448 = scmp.le.s32.totalorder 1, %s28
      %p449 = scmp.lt.s32.totalorder %s28, 37
      %p450 = pnand %p448, %p449
      %p451 = pneg %p450
      // Predicated region
      $region57: #{tpu_custom_call.1} parent=5 // pred_check
        _
      $region58: #{tpu_custom_call.1} parent=5 // pred_check_branch
        %453 = sbr.rel (%p450) target = $region60
      $region59: #{tpu_custom_call.1} parent=5 // pred_region
        %s454 = ssub.s32 %s28, 1
        // Predicated region
        $region61: #{tpu_custom_call.1} parent=59 // pred_check
          %p455 = pneg %p89
        $region62: #{tpu_custom_call.1} parent=59 // pred_check_branch
          %457 = sbr.rel (%p455) target = $region64
        $region63: #{tpu_custom_call.1} parent=59 // pred_region
          %458 = dma.done [#allocation9], 128
        $region64: #{tpu_custom_call.1} parent=59 // pred_fallthru
          _
        // Predicated region
        $region65: #{tpu_custom_call.1} parent=59 // pred_check
          %p459 = pneg %p110
        $region66: #{tpu_custom_call.1} parent=59 // pred_check_branch
          %461 = sbr.rel (%p459) target = $region68
        $region67: #{tpu_custom_call.1} parent=59 // pred_region
          %462 = dma.done [#allocation8], 16
        $region68: #{tpu_custom_call.1} parent=59 // pred_fallthru
          _
        %s463 = sand.u32 %s123, 1
        %s464 = scalar_lea.sflag [#allocation6], %s463
        %s465 = sand.u32 %s123, 1
        %s466 = smul.addr %s465, 8
        %s467 = scalar_lea.vmem [#allocation11], %s466
        // Predicated region
        $region69: #{tpu_custom_call.1} parent=59 // pred_check
          %p468 = pneg %p136
        $region70: #{tpu_custom_call.1} parent=59 // pred_check_branch
          %470 = sbr.rel (%p468) target = $region72
        $region71: #{tpu_custom_call.1} parent=59 // pred_region
          %471 = dma.done %s464, 128
        $region72: #{tpu_custom_call.1} parent=59 // pred_fallthru
          _
        %s472 = sand.u32 %s33, 1
        %s473 = scalar_lea.sflag [#allocation13], %s472
        %s474 = sand.u32 %s181, 1
        %s475 = smul.addr %s474, 8
        %s476 = scalar_lea.vmem [#allocation12], %s475
        // Predicated region
        $region73: #{tpu_custom_call.1} parent=59 // pred_check
          %p477 = pneg %p194
        $region74: #{tpu_custom_call.1} parent=59 // pred_check_branch
          %479 = sbr.rel (%p477) target = $region76
        $region75: #{tpu_custom_call.1} parent=59 // pred_region
          %480 = dma.done %s473, 128
        $region76: #{tpu_custom_call.1} parent=59 // pred_fallthru
          _
        %s481 = sand.u32 %s33, 1
        %s482 = scalar_lea.sflag [#allocation13], %s481
        %s483 = sand.u32 %s211, 1
        %s484 = smul.addr %s483, 8
        %s485 = scalar_lea.vmem [#allocation14], %s484
        // Predicated region
        $region77: #{tpu_custom_call.1} parent=59 // pred_check
          %p486 = pneg %p224
        $region78: #{tpu_custom_call.1} parent=59 // pred_check_branch
          %488 = sbr.rel (%p486) target = $region80
        $region79: #{tpu_custom_call.1} parent=59 // pred_region
          %489 = dma.done %s482, 128
        $region80: #{tpu_custom_call.1} parent=59 // pred_fallthru
          _
        %490 = sfence
        %p491 = pneg %p68
        %p492 = pneg %p65
        %p493 = pneg %p89
        %p494 = pneg %p86
        %p495 = pneg %p110
        %p496 = pneg %p107
        %s497 = sand.u32 %s123, 1
        %s498 = scalar_lea.sflag [#allocation6], %s497
        %s499 = sand.u32 %s123, 1
        %s500 = smul.addr %s499, 8
        %s501 = scalar_lea.vmem [#allocation11], %s500
        %p502 = pneg %p136
        %p503 = pneg %p133
        %p504 = scmp.lt.s32.totalorder %s39, 2
        %s505 = scalar_select %p504, %s39, 2
        %p506 = scmp.lt.s32.totalorder %s38, 1
        %s507 = scalar_select %p506, %s38, 1
        %s508 = smul.addr %s507, 2
        %s509 = smul.addr %s505, 4
        %s510 = sadd.s32 %s508, %s509
        %s511 = smul.addr %s510, 8
        %s512 = scalar_lea.vmem %s4, %s511
        %p513 = pneg %p164
        %p514 = pneg %p161
        %s515 = sand.u32 %s33, 1
        %s516 = scalar_lea.sflag [#allocation13], %s515
        %s517 = sand.u32 %s181, 1
        %s518 = smul.addr %s517, 8
        %s519 = scalar_lea.vmem [#allocation12], %s518
        %p520 = pneg %p194
        %p521 = pneg %p191
        %s522 = sand.u32 %s33, 1
        %s523 = scalar_lea.sflag [#allocation13], %s522
        %s524 = sand.u32 %s211, 1
        %s525 = smul.addr %s524, 8
        %s526 = scalar_lea.vmem [#allocation14], %s525
        %p527 = pneg %p224
        %p528 = pneg %p221
        %p529 = pneg %p245
        %p530 = pneg %p242
        %p531 = pneg %p266
        %p532 = pneg %p263
        %p533 = pneg %p287
        %p534 = pneg %p284
        %p535 = pneg %p315
        %p536 = pneg %p312
        %s537 = sand.u32 %s302, 1
        %s538 = scalar_lea.sflag [#allocation7], %s537
        %s539 = sand.u32 %s302, 1
        %s540 = smul.addr %s539, 8
        %s541 = scalar_lea.vmem [#allocation15], %s540
        %p542 = scmp.lt.s32.totalorder %s39, 2
        %s543 = scalar_select %p542, %s39, 2
        %p544 = scmp.lt.s32.totalorder %s38, 1
        %s545 = scalar_select %p544, %s38, 1
        %s546 = smul.addr %s545, 2
        %s547 = smul.addr %s543, 4
        %s548 = sadd.s32 %s546, %s547
        %s549 = smul.addr %s548, 8
        %s550 = scalar_lea.vmem %s4, %s549
        %p551 = scmp.eq.s32.totalorder %s39, 0
        %p552 = scmp.eq.s32.totalorder %s40, 0
        %p553 = pnand %p551, %p552
        %p554 = pneg %p553
        // Predicated region
        $region81: #{tpu_custom_call.1} parent=59 // pred_check
          _
        $region82: #{tpu_custom_call.1} parent=59 // pred_check_branch
          %556 = sbr.rel (%p553) target = $region84
        $region83: #{tpu_custom_call.1} parent=59 // pred_region
          %v557 = vld [vmem:[%s467] sm:$0xff]
          %vm558 = vcmask 64512
          %559 = vst.msk [vmem:[#allocation2] sm:$0xff] %vm558, %v557
        $region84: #{tpu_custom_call.1} parent=59 // pred_fallthru
          _
        // Predicated region
        $region85: #{tpu_custom_call.1} parent=59 // pred_check
          %p560 = pneg %p552
        $region86: #{tpu_custom_call.1} parent=59 // pred_check_branch
          %562 = sbr.rel (%p560) target = $region88
        $region87: #{tpu_custom_call.1} parent=59 // pred_region
          %s563 = sld [smem:[#allocation4]]
          %v564 = vld [vmem:[%s550] sm:$0xff]
          %v565 = vld [vmem:[%s550 + $0x8] sm:$0xff]
          %v566 = vstv %s563
          %v567 = vmul.f32 %v566, %v564
          %v568 = vmul.f32 %v566, %v565
          %vm569 = vcmask 64512
          %570 = vst.msk [vmem:[#allocation3] sm:$0xff] %vm569, %v567
          %571 = vst.msk [vmem:[#allocation3 + $0x8] sm:$0xff] %vm569, %v568
        $region88: #{tpu_custom_call.1} parent=59 // pred_fallthru
          _
        %s572 = smul.u32 %s40, 128
        %s573 = sld [smem:[#allocation5 + %s572]]
        %s574 = sadd.s32 %s572, 1
        %s575 = sld [smem:[#allocation5 + %s574]]
        %s576 = sadd.s32 %s572, 2
        %s577 = sld [smem:[#allocation5 + %s576]]
        %s578 = sadd.s32 %s572, 3
        %s579 = sld [smem:[#allocation5 + %s578]]
        %s580 = sadd.s32 %s572, 4
        %s581 = sld [smem:[#allocation5 + %s580]]
        %s582 = sadd.s32 %s572, 5
        %s583 = sld [smem:[#allocation5 + %s582]]
        %s584 = sadd.s32 %s572, 6
        %s585 = sld [smem:[#allocation5 + %s584]]
        %s586 = sadd.s32 %s572, 7
        %s587 = sld [smem:[#allocation5 + %s586]]
        %s588 = sadd.s32 %s572, 8
        %s589 = sld [smem:[#allocation5 + %s588]]
        %s590 = sadd.s32 %s572, 9
        %s591 = sld [smem:[#allocation5 + %s590]]
        %s592 = sadd.s32 %s572, 10
        %s593 = sld [smem:[#allocation5 + %s592]]
        %s594 = sadd.s32 %s572, 11
        %s595 = sld [smem:[#allocation5 + %s594]]
        %s596 = sadd.s32 %s572, 12
        %s597 = sld [smem:[#allocation5 + %s596]]
        %s598 = sadd.s32 %s572, 13
        %s599 = sld [smem:[#allocation5 + %s598]]
        %v600 = vld [vmem:[#allocation2] sm:$0xff]
        %vm601 = vcmask 64512
        %602 = vst.msk [vmem:[#allocation3] sm:$0xff] %vm601, %v600
        %v603 = vld [vmem:[%s476] sm:$0xf]
        %v604 = vld [vmem:[%s476 + $0x4] sm:$0xf]
        %v605 = vunpack.c.l.bf16 %v603
        %v606 = vunpack.c.l.bf16 %v604
        %v607 = vstv %s573
        %v608 = vmul.f32 %v607, %v605
        %v609 = vmul.f32 %v607, %v606
        %v610 = vld [vmem:[#allocation3] sm:$0xff]
        %v611 = vld [vmem:[#allocation3 + $0x8] sm:$0xff]
        %v612 = vadd.f32 %v610, %v608
        %v613 = vadd.f32 %v611, %v609
        %v614 = vstv %s575
        %v615 = vmul.f32 %v614, %v612
        %v616 = vmul.f32 %v614, %v613
        %v617 = vld [vmem:[%s7] sm:$0xff]
        %619 = vset.pattern.permute.xlu0 0
        %620 = vperm.xlu0 %619, %v617
        %v621 = vpop.permute.xlu0 %620
        %v623 = vlaneseq
        %v624 = vshrl.u32 %v623, 7
        %v625 = vsub.s32 0, %v624
        %v626 = vrot.slane %v615, %v625
        %v627 = vlaneseq
        %v628 = vshrl.u32 %v627, 7
        %v629 = vsub.s32 0, %v628
        %v630 = vrot.slane %v616, %v629
        %v631 = vmul.f32 %v621, %v626
        %v632 = vmul.f32 %v621, %v630
        %s633 = scalar_lea.vmem %s7, 8
        %v634 = vld [vmem:[%s633] sm:$0xff]
        %636 = vset.pattern.permute.xlu0 0
        %637 = vperm.xlu0 %636, %v634
        %v638 = vpop.permute.xlu0 %637
        %v640 = vlaneseq
        %v641 = vshrl.u32 %v640, 7
        %v642 = vsub.s32 1, %v641
        %v643 = vrot.slane %v615, %v642
        %v644 = vlaneseq
        %v645 = vshrl.u32 %v644, 7
        %v646 = vsub.s32 1, %v645
        %v647 = vrot.slane %v616, %v646
        %v648 = vmul.f32 %v638, %v643
        %v649 = vmul.f32 %v638, %v647
        %v650 = vadd.f32 %v631, %v648
        %v651 = vadd.f32 %v632, %v649
        %s652 = scalar_lea.vmem %s7, 16
        %v653 = vld [vmem:[%s652] sm:$0xff]
        %655 = vset.pattern.permute.xlu0 0
        %656 = vperm.xlu0 %655, %v653
        %v657 = vpop.permute.xlu0 %656
        %v659 = vlaneseq
        %v660 = vshrl.u32 %v659, 7
        %v661 = vsub.s32 2, %v660
        %v662 = vrot.slane %v615, %v661
        %v663 = vlaneseq
        %v664 = vshrl.u32 %v663, 7
        %v665 = vsub.s32 2, %v664
        %v666 = vrot.slane %v616, %v665
        %v667 = vmul.f32 %v657, %v662
        %v668 = vmul.f32 %v657, %v666
        %v669 = vadd.f32 %v650, %v667
        %v670 = vadd.f32 %v651, %v668
        %s671 = scalar_lea.vmem %s7, 24
        %v672 = vld [vmem:[%s671] sm:$0xff]
        %674 = vset.pattern.permute.xlu0 0
        %675 = vperm.xlu0 %674, %v672
        %v676 = vpop.permute.xlu0 %675
        %v678 = vlaneseq
        %v679 = vshrl.u32 %v678, 7
        %v680 = vsub.s32 3, %v679
        %v681 = vrot.slane %v615, %v680
        %v682 = vlaneseq
        %v683 = vshrl.u32 %v682, 7
        %v684 = vsub.s32 3, %v683
        %v685 = vrot.slane %v616, %v684
        %v686 = vmul.f32 %v676, %v681
        %v687 = vmul.f32 %v676, %v685
        %v688 = vadd.f32 %v669, %v686
        %v689 = vadd.f32 %v670, %v687
        %s690 = scalar_lea.vmem %s7, 32
        %v691 = vld [vmem:[%s690] sm:$0xff]
        %693 = vset.pattern.permute.xlu0 0
        %694 = vperm.xlu0 %693, %v691
        %v695 = vpop.permute.xlu0 %694
        %v697 = vlaneseq
        %v698 = vshrl.u32 %v697, 7
        %v699 = vsub.s32 4, %v698
        %v700 = vrot.slane %v615, %v699
        %v701 = vlaneseq
        %v702 = vshrl.u32 %v701, 7
        %v703 = vsub.s32 4, %v702
        %v704 = vrot.slane %v616, %v703
        %v705 = vmul.f32 %v695, %v700
        %v706 = vmul.f32 %v695, %v704
        %v707 = vadd.f32 %v688, %v705
        %v708 = vadd.f32 %v689, %v706
        %s709 = scalar_lea.vmem %s7, 40
        %v710 = vld [vmem:[%s709] sm:$0xff]
        %712 = vset.pattern.permute.xlu0 0
        %713 = vperm.xlu0 %712, %v710
        %v714 = vpop.permute.xlu0 %713
        %v716 = vlaneseq
        %v717 = vshrl.u32 %v716, 7
        %v718 = vsub.s32 5, %v717
        %v719 = vrot.slane %v615, %v718
        %v720 = vlaneseq
        %v721 = vshrl.u32 %v720, 7
        %v722 = vsub.s32 5, %v721
        %v723 = vrot.slane %v616, %v722
        %v724 = vmul.f32 %v714, %v719
        %v725 = vmul.f32 %v714, %v723
        %v726 = vadd.f32 %v707, %v724
        %v727 = vadd.f32 %v708, %v725
        %s728 = scalar_lea.vmem %s7, 48
        %v729 = vld [vmem:[%s728] sm:$0xff]
        %731 = vset.pattern.permute.xlu0 0
        %732 = vperm.xlu0 %731, %v729
        %v733 = vpop.permute.xlu0 %732
        %v735 = vlaneseq
        %v736 = vshrl.u32 %v735, 7
        %v737 = vsub.s32 6, %v736
        %v738 = vrot.slane %v615, %v737
        %v739 = vlaneseq
        %v740 = vshrl.u32 %v739, 7
        %v741 = vsub.s32 6, %v740
        %v742 = vrot.slane %v616, %v741
        %v743 = vmul.f32 %v733, %v738
        %v744 = vmul.f32 %v733, %v742
        %v745 = vadd.f32 %v726, %v743
        %v746 = vadd.f32 %v727, %v744
        %s747 = scalar_lea.vmem %s7, 56
        %v748 = vld [vmem:[%s747] sm:$0xff]
        %750 = vset.pattern.permute.xlu0 0
        %751 = vperm.xlu0 %750, %v748
        %v752 = vpop.permute.xlu0 %751
        %v754 = vlaneseq
        %v755 = vshrl.u32 %v754, 7
        %v756 = vsub.s32 7, %v755
        %v757 = vrot.slane %v615, %v756
        %v758 = vlaneseq
        %v759 = vshrl.u32 %v758, 7
        %v760 = vsub.s32 7, %v759
        %v761 = vrot.slane %v616, %v760
        %v762 = vmul.f32 %v752, %v757
        %v763 = vmul.f32 %v752, %v761
        %v764 = vadd.f32 %v745, %v762
        %v765 = vadd.f32 %v746, %v763
        %v766 = vld [vmem:[%s8] sm:$0xff]
        %768 = vset.pattern.permute.xlu0 0
        %769 = vperm.xlu0 %768, %v766
        %v770 = vpop.permute.xlu0 %769
        %v772 = vadd.f32 %v764, %v770
        %v773 = vadd.f32 %v765, %v770
        %v774 = vld [vmem:[%s9] sm:$0xff]
        %v775 = vstv %s581
        %v776 = vmul.f32 %v775, %v774
        %778 = vset.pattern.permute.xlu0 0
        %779 = vperm.xlu0 %778, %v776
        %v780 = vpop.permute.xlu0 %779
        %v782 = vadd.f32 %v772, %v780
        %v783 = vadd.f32 %v773, %v780
        %v784 = vstv %s577
        %v785 = vmul.f32 %v784, %v612
        %v786 = vmul.f32 %v784, %v613
        %v787 = vstv %s579
        %v788 = vmul.f32 %v787, %v782
        %v789 = vmul.f32 %v787, %v783
        %v790 = vadd.f32 %v785, %v788
        %v791 = vadd.f32 %v786, %v789
        %v792 = vmax.f32 %v790, -1.0
        %v793 = vmax.f32 %v791, -1.0
        %v794 = vmin.f32 %v792, 1.0
        %v795 = vmin.f32 %v793, 1.0
        %v796 = vsub.f32 %v612, %v794
        %v797 = vsub.f32 %v613, %v795
        %v798 = vstv %s583
        %v799 = vmul.f32 %v796, %v798
        %v800 = vmul.f32 %v797, %v798
        %v801 = vstv %s585
        %v802 = vmul.f32 %v801, %v799
        %v803 = vmul.f32 %v801, %v800
        %v804 = vadd.f32 %v612, %v802
        %v805 = vadd.f32 %v613, %v803
        %v806 = vld [vmem:[%s485] sm:$0xf]
        %v807 = vld [vmem:[%s485 + $0x4] sm:$0xf]
        %v808 = vunpack.c.l.bf16 %v806
        %v809 = vunpack.c.l.bf16 %v807
        %v810 = vstv %s599
        %v811 = vmul.f32 %v810, %v808
        %v812 = vmul.f32 %v810, %v809
        %v813 = vadd.f32 %v804, %v811
        %v814 = vadd.f32 %v805, %v812
        %815 = vst.msk [vmem:[#allocation3] sm:$0xff] %vm601, %v813
        %816 = vst.msk [vmem:[#allocation3 + $0x8] sm:$0xff] %vm601, %v814
        %s817 = sld [smem:[#allocation10 + %s40]]
        %p818 = scmp.ne.s32.totalorder %s817, 0
        // Predicated region
        $region89: #{tpu_custom_call.1} parent=59 // pred_check
          %p819 = pneg %p818
        $region90: #{tpu_custom_call.1} parent=59 // pred_check_branch
          %821 = sbr.rel (%p819) target = $region92
        $region91: #{tpu_custom_call.1} parent=59 // pred_region
          %v822 = vstv %s589
          %v823 = vmul.f32 %v822, %v804
          %v824 = vmul.f32 %v822, %v805
          %v825 = vld [vmem:[%s7] sm:$0xff]
          %827 = vset.pattern.permute.xlu0 0
          %828 = vperm.xlu0 %827, %v825
          %v829 = vpop.permute.xlu0 %828
          %v831 = vlaneseq
          %v832 = vshrl.u32 %v831, 7
          %v833 = vsub.s32 0, %v832
          %v834 = vrot.slane %v823, %v833
          %v835 = vlaneseq
          %v836 = vshrl.u32 %v835, 7
          %v837 = vsub.s32 0, %v836
          %v838 = vrot.slane %v824, %v837
          %v839 = vmul.f32 %v829, %v834
          %v840 = vmul.f32 %v829, %v838
          %v841 = vld [vmem:[%s633] sm:$0xff]
          %843 = vset.pattern.permute.xlu0 0
          %844 = vperm.xlu0 %843, %v841
          %v845 = vpop.permute.xlu0 %844
          %v847 = vlaneseq
          %v848 = vshrl.u32 %v847, 7
          %v849 = vsub.s32 1, %v848
          %v850 = vrot.slane %v823, %v849
          %v851 = vlaneseq
          %v852 = vshrl.u32 %v851, 7
          %v853 = vsub.s32 1, %v852
          %v854 = vrot.slane %v824, %v853
          %v855 = vmul.f32 %v845, %v850
          %v856 = vmul.f32 %v845, %v854
          %v857 = vadd.f32 %v839, %v855
          %v858 = vadd.f32 %v840, %v856
          %v859 = vld [vmem:[%s652] sm:$0xff]
          %861 = vset.pattern.permute.xlu0 0
          %862 = vperm.xlu0 %861, %v859
          %v863 = vpop.permute.xlu0 %862
          %v865 = vlaneseq
          %v866 = vshrl.u32 %v865, 7
          %v867 = vsub.s32 2, %v866
          %v868 = vrot.slane %v823, %v867
          %v869 = vlaneseq
          %v870 = vshrl.u32 %v869, 7
          %v871 = vsub.s32 2, %v870
          %v872 = vrot.slane %v824, %v871
          %v873 = vmul.f32 %v863, %v868
          %v874 = vmul.f32 %v863, %v872
          %v875 = vadd.f32 %v857, %v873
          %v876 = vadd.f32 %v858, %v874
          %v877 = vld [vmem:[%s671] sm:$0xff]
          %879 = vset.pattern.permute.xlu0 0
          %880 = vperm.xlu0 %879, %v877
          %v881 = vpop.permute.xlu0 %880
          %v883 = vlaneseq
          %v884 = vshrl.u32 %v883, 7
          %v885 = vsub.s32 3, %v884
          %v886 = vrot.slane %v823, %v885
          %v887 = vlaneseq
          %v888 = vshrl.u32 %v887, 7
          %v889 = vsub.s32 3, %v888
          %v890 = vrot.slane %v824, %v889
          %v891 = vmul.f32 %v881, %v886
          %v892 = vmul.f32 %v881, %v890
          %v893 = vadd.f32 %v875, %v891
          %v894 = vadd.f32 %v876, %v892
          %v895 = vld [vmem:[%s690] sm:$0xff]
          %897 = vset.pattern.permute.xlu0 0
          %898 = vperm.xlu0 %897, %v895
          %v899 = vpop.permute.xlu0 %898
          %v901 = vlaneseq
          %v902 = vshrl.u32 %v901, 7
          %v903 = vsub.s32 4, %v902
          %v904 = vrot.slane %v823, %v903
          %v905 = vlaneseq
          %v906 = vshrl.u32 %v905, 7
          %v907 = vsub.s32 4, %v906
          %v908 = vrot.slane %v824, %v907
          %v909 = vmul.f32 %v899, %v904
          %v910 = vmul.f32 %v899, %v908
          %v911 = vadd.f32 %v893, %v909
          %v912 = vadd.f32 %v894, %v910
          %v913 = vld [vmem:[%s709] sm:$0xff]
          %915 = vset.pattern.permute.xlu0 0
          %916 = vperm.xlu0 %915, %v913
          %v917 = vpop.permute.xlu0 %916
          %v919 = vlaneseq
          %v920 = vshrl.u32 %v919, 7
          %v921 = vsub.s32 5, %v920
          %v922 = vrot.slane %v823, %v921
          %v923 = vlaneseq
          %v924 = vshrl.u32 %v923, 7
          %v925 = vsub.s32 5, %v924
          %v926 = vrot.slane %v824, %v925
          %v927 = vmul.f32 %v917, %v922
          %v928 = vmul.f32 %v917, %v926
          %v929 = vadd.f32 %v911, %v927
          %v930 = vadd.f32 %v912, %v928
          %v931 = vld [vmem:[%s728] sm:$0xff]
          %933 = vset.pattern.permute.xlu0 0
          %934 = vperm.xlu0 %933, %v931
          %v935 = vpop.permute.xlu0 %934
          %v937 = vlaneseq
          %v938 = vshrl.u32 %v937, 7
          %v939 = vsub.s32 6, %v938
          %v940 = vrot.slane %v823, %v939
          %v941 = vlaneseq
          %v942 = vshrl.u32 %v941, 7
          %v943 = vsub.s32 6, %v942
          %v944 = vrot.slane %v824, %v943
          %v945 = vmul.f32 %v935, %v940
          %v946 = vmul.f32 %v935, %v944
          %v947 = vadd.f32 %v929, %v945
          %v948 = vadd.f32 %v930, %v946
          %v949 = vld [vmem:[%s747] sm:$0xff]
          %951 = vset.pattern.permute.xlu0 0
          %952 = vperm.xlu0 %951, %v949
          %v953 = vpop.permute.xlu0 %952
          %v955 = vlaneseq
          %v956 = vshrl.u32 %v955, 7
          %v957 = vsub.s32 7, %v956
          %v958 = vrot.slane %v823, %v957
          %v959 = vlaneseq
          %v960 = vshrl.u32 %v959, 7
          %v961 = vsub.s32 7, %v960
          %v962 = vrot.slane %v824, %v961
          %v963 = vmul.f32 %v953, %v958
          %v964 = vmul.f32 %v953, %v962
          %v965 = vadd.f32 %v947, %v963
          %v966 = vadd.f32 %v948, %v964
          %v967 = vld [vmem:[%s8] sm:$0xff]
          %969 = vset.pattern.permute.xlu0 0
          %970 = vperm.xlu0 %969, %v967
          %v971 = vpop.permute.xlu0 %970
          %v973 = vadd.f32 %v965, %v971
          %v974 = vadd.f32 %v966, %v971
          %v975 = vld [vmem:[%s9] sm:$0xff]
          %v976 = vstv %s595
          %v977 = vmul.f32 %v976, %v975
          %979 = vset.pattern.permute.xlu0 0
          %980 = vperm.xlu0 %979, %v977
          %v981 = vpop.permute.xlu0 %980
          %v983 = vadd.f32 %v973, %v981
          %v984 = vadd.f32 %v974, %v981
          %v985 = vstv %s591
          %v986 = vmul.f32 %v985, %v804
          %v987 = vmul.f32 %v985, %v805
          %v988 = vstv %s593
          %v989 = vmul.f32 %v988, %v983
          %v990 = vmul.f32 %v988, %v984
          %v991 = vadd.f32 %v986, %v989
          %v992 = vadd.f32 %v987, %v990
          %v993 = vmax.f32 %v991, -1.0
          %v994 = vmax.f32 %v992, -1.0
          %v995 = vmin.f32 %v993, 1.0
          %v996 = vmin.f32 %v994, 1.0
          %v997 = vsub.f32 %v804, %v995
          %v998 = vsub.f32 %v805, %v996
          %v999 = vstv %s597
          %v1000 = vmul.f32 %v997, %v999
          %v1001 = vmul.f32 %v998, %v999
          %v1002 = vadd.f32 %v799, %v1000
          %v1003 = vadd.f32 %v800, %v1001
          %v1004 = vstv %s587
          %v1005 = vmul.f32 %v1004, %v1002
          %v1006 = vmul.f32 %v1004, %v1003
          %v1007 = vadd.f32 %v612, %v1005
          %v1008 = vadd.f32 %v613, %v1006
          %v1009 = vadd.f32 %v1007, %v811
          %v1010 = vadd.f32 %v1008, %v812
          %1011 = vst.msk [vmem:[#allocation3] sm:$0xff] %vm601, %v1009
          %1012 = vst.msk [vmem:[#allocation3 + $0x8] sm:$0xff] %vm601, %v1010
        $region92: #{tpu_custom_call.1} parent=59 // pred_fallthru
          _
        %p1013 = scmp.eq.s32.totalorder %s40, 5
        // Predicated region
        $region93: #{tpu_custom_call.1} parent=59 // pred_check
          %p1014 = pneg %p1013
        $region94: #{tpu_custom_call.1} parent=59 // pred_check_branch
          %1016 = sbr.rel (%p1014) target = $region96
        $region95: #{tpu_custom_call.1} parent=59 // pred_region
          %s1017 = scalar_lea.vmem [#allocation3], 8
          %v1018 = vld [vmem:[%s1017] sm:$0xff]
          %v1019 = vmax.f32 %v1018, -1.0
          %v1020 = vmin.f32 %v1019, 1.0
          %1021 = vst.msk [vmem:[%s541] sm:$0xff] %vm601, %v1020
          %1022 = vst.msk [vmem:[#allocation2] sm:$0xff] %vm601, %v1020
        $region96: #{tpu_custom_call.1} parent=59 // pred_fallthru
          _
        %s1023 = sand.u32 %s302, 1
        %s1024 = scalar_lea.sflag [#allocation7], %s1023
        %s1025 = sand.u32 %s302, 1
        %s1026 = smul.addr %s1025, 8
        %s1027 = scalar_lea.vmem [#allocation15], %s1026
        // Predicated region
        $region97: #{tpu_custom_call.1} parent=59 // pred_check
          %p1028 = pneg %p312
        $region98: #{tpu_custom_call.1} parent=59 // pred_check_branch
          %1030 = sbr.rel (%p1028) target = $region100
        $region99: #{tpu_custom_call.1} parent=59 // pred_region
          %s1032 = ssub.s32 128, 128
          %1033 = vsyncadd %s1024, %s1032
          %s1034 = smul.addr %s39, 2
          %s1035 = sadd.s32 %s38, %s1034
          %s1036 = smul.addr %s1035, 128
          %s1037 = scalar_lea.hbm %s10, %s1036
          %s1039 = sshll.u32 %s1027, 4
          %s1040 = int_to_ptr.vmem [resolvable:$true] %s1039
          %1042 = dma.vmem_to_hbm [thread:$0]  %s1040, 128, %s1037, %s1024
        $region100: #{tpu_custom_call.1} parent=59 // pred_fallthru
          _
      $region60: #{tpu_custom_call.1} parent=5 // pred_fallthru
        _
      %p1043 = scmp.le.s32.totalorder 2, %s28
      // Predicated region
      $region101: #{tpu_custom_call.1} parent=5 // pred_check
        %p1044 = pneg %p1043
      $region102: #{tpu_custom_call.1} parent=5 // pred_check_branch
        %1046 = sbr.rel (%p1044) target = $region104
      $region103: #{tpu_custom_call.1} parent=5 // pred_region
        %s1047 = ssub.s32 %s28, 2
        // Predicated region
        $region105: #{tpu_custom_call.1} parent=103 // pred_check
          %p1048 = pneg %p318
        $region106: #{tpu_custom_call.1} parent=103 // pred_check_branch
          %1050 = sbr.rel (%p1048) target = $region108
        $region107: #{tpu_custom_call.1} parent=103 // pred_region
          %s1051 = sand.u32 %s303, 1
          %s1052 = scalar_lea.sflag [#allocation7], %s1051
          %s1053 = sand.u32 %s303, 1
          %s1054 = smul.addr %s1053, 8
          %s1055 = scalar_lea.vmem [#allocation15], %s1054
          %1056 = dma.done %s1052, 128
        $region108: #{tpu_custom_call.1} parent=103 // pred_fallthru
          _
      $region104: #{tpu_custom_call.1} parent=5 // pred_fallthru
        _
    $region6: #{tpu_custom_call.1} parent=1 // loop_footer
      %s32 = sadd.s32 1, %s28
    $region7: #{tpu_custom_call.1} parent=1 // loop_footer_branch
      %27 = sbr.rel target = $region3
    $region8: #{tpu_custom_call.1} parent=1 // loop_exit
      _
    %1057 = vsyncpa [#allocation6], 1
    %s1058 = scalar_lea.sflag [#allocation6], 1
    %1059 = vsyncpa %s1058, 1
    %1060 = vsyncpa [#allocation13], 1
    %s1061 = scalar_lea.sflag [#allocation13], 1
    %1062 = vsyncpa %s1061, 1
    %1063 = vsyncpa [#allocation7], 1
    %s1064 = scalar_lea.sflag [#allocation7], 1
    %1065 = vsyncpa %s1064, 1
    %1066 = vsyncpa [#allocation8], 1
    %s1067 = scalar_lea.sflag [#allocation8], 1
    %1068 = vsyncpa %s1067, 1
    %1069 = vsyncpa [#allocation9], 1
    %s1070 = scalar_lea.sflag [#allocation9], 1
    %1071 = vsyncpa %s1070, 1

</llo_original>
